<compile_context>
chip_gen: v6e
topology: v6e:2x2x1
jax: 0.10.0
libtpu: 0.0.40
codegen_flags: <defaults>
</compile_context>

<pallas_src>
import functools

import jax
import jax.numpy as jnp
from jax import lax
from jax.experimental import pallas as pl
from jax.experimental.pallas import tpu as pltpu


def _round_up(x, m):
    return (x + m - 1) // m * m


def _choose_time_chunk(seq_len, bb, e, g3, mxu_itemsize, budget_bytes=6 << 20):
    """Largest Tc in [1, 32] whose double-buffered x slab + f32 gx slab fit budget."""
    per_step = bb * (2 * e * mxu_itemsize + g3 * 4)
    tc = min(32, seq_len, max(1, budget_bytes // max(per_step, 1)))
    return int(max(1, tc))


def _pad_gate_cols(w, h, hp):
    """(K, 3h) -> (K, 3hp) with gate g placed at columns [g*hp, g*hp + h)."""
    k = w.shape[0]
    out = jnp.zeros((k, 3 * hp), w.dtype)
    for g in range(3):
        out = out.at[:, g * hp:g * hp + h].set(w[:, g * h:(g + 1) * h])
    return out


# ---------------------------------------------------------------------------
# Fused kernel: per chunk, project Tc timesteps in one MXU matmul, then run
# the Tc-step GRU recurrence from VMEM; final Linear on the last chunk.
# ---------------------------------------------------------------------------
def gru_fused_kernel(x_ref, wih_ref, bih_ref, whh_ref, bhh_ref,
                     wfc_ref, bfc_ref, out_ref, h_ref,
                     *, seq_len, needs_mask):
    # x_ref  : (Tc, Bb, E)   embedding chunk (mxu dtype)
    # wih_ref: (E, 3Hp)      input->gates weights (gate-aligned, mxu dtype)
    # bih_ref: (1, 3Hp)      f32
    # whh_ref: (Hp, 3Hp)     hidden->gates weights (mxu dtype)
    # bhh_ref: (1, 3Hp)      f32
    # wfc_ref: (Hp, Cp)      fc weight (mxu dtype)
    # bfc_ref: (1, Cp)       f32
    # out_ref: (Bb, Cp)      logits (written on last chunk only)
    # h_ref  : (Bb, Hp)      persistent f32 hidden-state VMEM scratch
    c = pl.program_id(1)
    tc, bb, e = x_ref.shape
    hp = whh_ref.shape[0]
    g3 = 3 * hp

    @pl.when(c == 0)
    def _():
        h_ref[...] = jnp.zeros_like(h_ref)

    # Chunked input->hidden projection: ONE (Tc*Bb, E) @ (E, 3Hp) MXU matmul,
    # f32 accumulation, bias added once per chunk.
    x2d = x_ref[...].reshape(tc * bb, e)
    gx_all = (jnp.dot(x2d, wih_ref[...], preferred_element_type=jnp.float32)
              + bih_ref[...]).reshape(tc, bb, g3)

    whh = whh_ref[...]
    h = h_ref[...]

    # Fully-unrolled (static Tc) inner recurrence over this chunk's timesteps.
    # Only the unavoidable h @ W_hh runs per step; gate math stays in f32.
    for j in range(tc):
        gx = gx_all[j]                                              # (Bb, 3Hp)
        gh = (jnp.dot(h.astype(whh.dtype), whh,
                      preferred_element_type=jnp.float32) + bhh_ref[...])
        # Gate order [r, z, n]; each gate in its own 128-lane-aligned slab.
        r = jax.nn.sigmoid(gx[:, 0 * hp:1 * hp] + gh[:, 0 * hp:1 * hp])
        z = jax.nn.sigmoid(gx[:, 1 * hp:2 * hp] + gh[:, 1 * hp:2 * hp])
        n = jnp.tanh(gx[:, 2 * hp:3 * hp] + r * gh[:, 2 * hp:3 * hp])
        h_new = (1.0 - z) * n + z * h
        if needs_mask:
            # Padded tail timesteps (beyond the true sequence length) are a
            # no-op on the hidden state.
            valid = (c * tc + j) < seq_len
            h_new = jnp.where(valid, h_new, h)
        h = h_new
    h_ref[...] = h

    @pl.when(c == pl.num_programs(1) - 1)
    def _():
        out_ref[...] = (jnp.dot(h.astype(wfc_ref.dtype), wfc_ref[...],
                                preferred_element_type=jnp.float32)
                        + bfc_ref[...])


# ---------------------------------------------------------------------------
# Wrapper
# ---------------------------------------------------------------------------
def role_classifier_forward(tokens, params, *, mxu_dtype=jnp.float32):
    """tokens: (B, S) int32. Returns logits (B, num_classes) float32.

    mxu_dtype=jnp.bfloat16 casts the matmul operands (weights + streamed
    embeddings) to bf16 with f32 accumulation (recommended on v6e/v7x);
    elementwise gate math and the hidden state stay f32.
    """
    emb_table = params["emb"]
    E = params["w_ih"].shape[0]
    H = params["w_hh"].shape[0]
    C = params["w_fc"].shape[1]
    B, S = tokens.shape

    mxu_dtype = jnp.dtype(mxu_dtype)
    mxu_itemsize = mxu_dtype.itemsize
    sublane = 16 if mxu_dtype == jnp.dtype(jnp.bfloat16) else 8

    Bp = _round_up(B, sublane)    # sublane-dense batch
    Hp = _round_up(H, 128)        # lane-aligned per-gate width
    Cp = _round_up(C, 128)        # lane-dense output store
    G3 = 3 * Hp

    # Megacore (v7x): split the batch into 2 "parallel" blocks when wide
    # enough; each block carries its own hidden-state scratch.
    if Bp >= 2 * sublane and (Bp // 2) % sublane == 0:
        n_bb = 2
    else:
        n_bb = 1
    Bb = Bp // n_bb

    # Chunk the sequence: Tc timesteps per grid step, derived from a VMEM
    # budget (keeps double-buffered x slabs + resident weights well inside
    # the scoped limit on v5e's 16 MiB / v7x's 32 MiB defaults).
    Tc = _choose_time_chunk(S, Bb, E, G3, mxu_itemsize)
    Sp = _round_up(S, Tc)
    n_chunks = Sp // Tc

    # --- lane/sublane-dense parameter layout (zero padding; exact) ----------
    f32 = jnp.float32
    w_ih_p = _pad_gate_cols(params["w_ih"].astype(f32), H, Hp).astype(mxu_dtype)
    b_ih_p = _pad_gate_cols(params["b_ih"].astype(f32), H, Hp)
    w_hh_p = (jnp.zeros((Hp, G3), f32)
              .at[:H].set(_pad_gate_cols(params["w_hh"].astype(f32), H, Hp))
              ).astype(mxu_dtype)
    b_hh_p = _pad_gate_cols(params["b_hh"].astype(f32), H, Hp)
    w_fc_p = (jnp.zeros((Hp, Cp), f32)
              .at[:H, :C].set(params["w_fc"].astype(f32))).astype(mxu_dtype)
    b_fc_p = jnp.zeros((1, Cp), f32).at[:, :C].set(params["b_fc"].astype(f32))

    # --- embedding gather, directly in time-major order (no big transpose) --
    # Padded batch rows / tail timesteps use token id 0; padded timesteps are
    # masked inside the kernel and padded batch rows are sliced away below.
    tokens_p = jnp.pad(tokens, ((0, Bp - B), (0, Sp - S)))
    emb = jnp.take(emb_table, tokens_p.T, axis=0).astype(mxu_dtype)  # (Sp,Bp,E)

    kernel = functools.partial(gru_fused_kernel, seq_len=S,
                               needs_mask=(Sp != S))

    cost = pl.CostEstimate(
        flops=2 * Sp * Bp * G3 * (E + Hp) + 2 * Bp * Hp * Cp,
        transcendentals=3 * Sp * Bp * Hp,
        bytes_accessed=(Sp * Bp * E * mxu_itemsize
                        + (E * G3 + Hp * G3 + Hp * Cp) * mxu_itemsize
                        + 4 * (2 * G3 + Cp + Bp * Cp)))

    logits_p = pl.pallas_call(
        kernel,
        out_shape=jax.ShapeDtypeStruct((Bp, Cp), jnp.float32),
        grid=(n_bb, n_chunks),
        in_specs=[
            pl.BlockSpec((Tc, Bb, E), lambda bb, c: (c, bb, 0)),   # emb chunk
            pl.BlockSpec((E, G3), lambda bb, c: (0, 0)),           # w_ih
            pl.BlockSpec((1, G3), lambda bb, c: (0, 0)),           # b_ih
            pl.BlockSpec((Hp, G3), lambda bb, c: (0, 0)),          # w_hh
            pl.BlockSpec((1, G3), lambda bb, c: (0, 0)),           # b_hh
            pl.BlockSpec((Hp, Cp), lambda bb, c: (0, 0)),          # w_fc
            pl.BlockSpec((1, Cp), lambda bb, c: (0, 0)),           # b_fc
        ],
        out_specs=pl.BlockSpec((Bb, Cp), lambda bb, c: (bb, 0)),
        scratch_shapes=[pltpu.VMEM((Bb, Hp), jnp.float32)],        # hidden h
        compiler_params=pltpu.CompilerParams(
            dimension_semantics=("parallel", "arbitrary")),
        cost_estimate=cost,
    )(emb, w_ih_p, b_ih_p, w_hh_p, b_hh_p, w_fc_p, b_fc_p)

    return logits_p[:B, :C]


# ---------------------------------------------------------------------------
# Params + pure-JAX reference (PyTorch GRU semantics, gate order r,z,n)
# ---------------------------------------------------------------------------
def init_params(key, vocab_size, embed_dim, hidden_dim, num_classes):
    ks = jax.random.split(key, 7)
    scale = 0.1
    emb = scale * jax.random.normal(ks[0], (vocab_size, embed_dim), jnp.float32)
    emb = emb.at[0].set(0.0)  # padding_idx=0
    w_ih = scale * jax.random.normal(ks[1], (embed_dim, 3 * hidden_dim), jnp.float32)
    w_hh = scale * jax.random.normal(ks[2], (hidden_dim, 3 * hidden_dim), jnp.float32)
    b_ih = scale * jax.random.normal(ks[3], (1, 3 * hidden_dim), jnp.float32)
    b_hh = scale * jax.random.normal(ks[4], (1, 3 * hidden_dim), jnp.float32)
    w_fc = scale * jax.random.normal(ks[5], (hidden_dim, num_classes), jnp.float32)
    b_fc = scale * jax.random.normal(ks[6], (1, num_classes), jnp.float32)
    return dict(emb=emb, w_ih=w_ih, w_hh=w_hh, b_ih=b_ih, b_hh=b_hh,
                w_fc=w_fc, b_fc=b_fc)


def reference_forward(tokens, params):
    H = params["w_hh"].shape[0]
    emb = jnp.take(params["emb"], tokens, axis=0)         # (B, S, E)
    B, S, _ = emb.shape

    def step(h, x_t):
        gx = x_t @ params["w_ih"] + params["b_ih"]
        gh = h @ params["w_hh"] + params["b_hh"]
        r = jax.nn.sigmoid(gx[:, :H] + gh[:, :H])
        z = jax.nn.sigmoid(gx[:, H:2 * H] + gh[:, H:2 * H])
        n = jnp.tanh(gx[:, 2 * H:] + r * gh[:, 2 * H:])
        return (1.0 - z) * n + z * h, None

    h0 = jnp.zeros((B, H), jnp.float32)
    h_final, _ = lax.scan(step, h0, jnp.transpose(emb, (1, 0, 2)))
    return h_final @ params["w_fc"] + params["b_fc"]


if __name__ == "__main__":
    B, S = 2, 8
    VOCAB, EMBED, HIDDEN, NUM_CLASSES = 50, 128, 32, 16

    key = jax.random.PRNGKey(0)
    k_par, k_tok = jax.random.split(key)
    params = init_params(k_par, VOCAB, EMBED, HIDDEN, NUM_CLASSES)

    tokens = jax.random.randint(k_tok, (B, S), 0, VOCAB, dtype=jnp.int32)
    tokens = tokens.at[0, -2:].set(0)  # exercise padding_idx rows

    ref = reference_forward(tokens, params)

    # Exact-parity f32 path.
    logits = role_classifier_forward(tokens, params, mxu_dtype=jnp.float32)
    logits = jax.block_until_ready(logits)
    assert logits.shape == (B, NUM_CLASSES)
    assert jnp.allclose(logits, ref, atol=1e-4, rtol=1e-4), float(
        jnp.max(jnp.abs(logits - ref)))

    # bf16-MXU perf path (v5e/v6e/v7x); f32 accumulation, looser tolerance.
    logits_bf16 = role_classifier_forward(tokens, params,
                                          mxu_dtype=jnp.bfloat16)
    logits_bf16 = jax.block_until_ready(logits_bf16)
    assert logits_bf16.shape == (B, NUM_CLASSES)
    assert jnp.allclose(logits_bf16, ref, atol=5e-2, rtol=5e-2), float(
        jnp.max(jnp.abs(logits_bf16 - ref)))

    print("KERNEL_OK")
</pallas_src>

<mosaic_0001>
module attributes {stable_mosaic.version = 11 : i64} {
  func.func @gru_fused_kernel(%arg0: i32, %arg1: i32, %arg2: memref<8x8x128xf32, #tpu.memory_space<vmem>>, %arg3: memref<128x384xf32, #tpu.memory_space<vmem>>, %arg4: memref<1x384xf32, #tpu.memory_space<vmem>>, %arg5: memref<128x384xf32, #tpu.memory_space<vmem>>, %arg6: memref<1x384xf32, #tpu.memory_space<vmem>>, %arg7: memref<128x128xf32, #tpu.memory_space<vmem>>, %arg8: memref<1x128xf32, #tpu.memory_space<vmem>>, %arg9: memref<8x128xf32, #tpu.memory_space<vmem>>, %arg10: memref<8x128xf32, #tpu.memory_space<vmem>>) attributes {dimension_semantics = [#tpu.dimension_semantics<parallel>, #tpu.dimension_semantics<arbitrary>], iteration_bounds = array<i64: 1, 1>, scalar_prefetch = 0 : i64, scratch_operands = 1 : i64, tpu.core_type = #tpu.core_type<tc>, window_params = [{transform_indices = @transform_0, window_bounds = array<i64: 8, 8, 128>}, {pipeline_mode = #tpu.pipeline_mode<synchronous>, transform_indices = @transform_1, window_bounds = array<i64: 128, 384>}, {pipeline_mode = #tpu.pipeline_mode<synchronous>, transform_indices = @transform_2, window_bounds = array<i64: 1, 384>}, {pipeline_mode = #tpu.pipeline_mode<synchronous>, transform_indices = @transform_3, window_bounds = array<i64: 128, 384>}, {pipeline_mode = #tpu.pipeline_mode<synchronous>, transform_indices = @transform_4, window_bounds = array<i64: 1, 384>}, {pipeline_mode = #tpu.pipeline_mode<synchronous>, transform_indices = @transform_5, window_bounds = array<i64: 128, 128>}, {pipeline_mode = #tpu.pipeline_mode<synchronous>, transform_indices = @transform_6, window_bounds = array<i64: 1, 128>}, {transform_indices = @transform_7, window_bounds = array<i64: 8, 128>}]} {
    %c0_i32 = arith.constant 0 : i32
    %0 = arith.cmpi eq, %arg1, %c0_i32 : i32
    %1 = arith.extui %0 : i1 to i32
    %c0_i32_0 = arith.constant 0 : i32
    %2 = arith.cmpi ne, %1, %c0_i32_0 : i32
    scf.if %2 {
      %cst_63 = arith.constant 0.000000e+00 : f32
      %273 = vector.broadcast %cst_63 : f32 to vector<8x128xf32>
      %c0_64 = arith.constant 0 : index
      %c0_65 = arith.constant 0 : index
      %274 = vector.load %arg10[%c0_64, %c0_65] : memref<8x128xf32, #tpu.memory_space<vmem>>, vector<8x128xf32>
      tpu.vector_store %arg10[%c0_64, %c0_65], %273 {strides = array<i32>} : memref<8x128xf32, #tpu.memory_space<vmem>>, vector<8x128xf32>,
    } else {
    }
    %c0 = arith.constant 0 : index
    %c0_1 = arith.constant 0 : index
    %c0_2 = arith.constant 0 : index
    %3 = vector.load %arg2[%c0, %c0_1, %c0_2] : memref<8x8x128xf32, #tpu.memory_space<vmem>>, vector<8x8x128xf32>
    %4 = vector.shape_cast %3 : vector<8x8x128xf32> to vector<64x128xf32>
    %c0_3 = arith.constant 0 : index
    %c0_4 = arith.constant 0 : index
    %5 = vector.load %arg3[%c0_3, %c0_4] : memref<128x384xf32, #tpu.memory_space<vmem>>, vector<128x384xf32>
    %cst = arith.constant dense<0.000000e+00> : vector<64x384xf32>
    %6 = tpu.matmul %4, %5, %cst {dimension_numbers = #tpu.dot_dimension_numbers<[1], [0], [0], [1], [0, 0, 1, 1], [], []>} : vector<64x128xf32>, vector<128x384xf32>, vector<64x384xf32> -> vector<64x384xf32>
    %c0_5 = arith.constant 0 : index
    %c0_6 = arith.constant 0 : index
    %7 = vector.load %arg4[%c0_5, %c0_6] : memref<1x384xf32, #tpu.memory_space<vmem>>, vector<1x384xf32>
    %8 = vector.broadcast %7 : vector<1x384xf32> to vector<64x384xf32>
    %9 = arith.addf %6, %8 : vector<64x384xf32>
    %10 = vector.shape_cast %9 : vector<64x384xf32> to vector<8x8x384xf32>
    %c0_7 = arith.constant 0 : index
    %c0_8 = arith.constant 0 : index
    %11 = vector.load %arg5[%c0_7, %c0_8] : memref<128x384xf32, #tpu.memory_space<vmem>>, vector<128x384xf32>
    %c0_9 = arith.constant 0 : index
    %c0_10 = arith.constant 0 : index
    %12 = vector.load %arg10[%c0_9, %c0_10] : memref<8x128xf32, #tpu.memory_space<vmem>>, vector<8x128xf32>
    %13 = vector.extract_strided_slice %10 {offsets = [0, 0, 0], sizes = [1, 8, 384], strides = [1, 1, 1]} : vector<8x8x384xf32> to vector<1x8x384xf32>
    %14 = vector.shape_cast %13 : vector<1x8x384xf32> to vector<8x384xf32>
    %cst_11 = arith.constant dense<0.000000e+00> : vector<8x384xf32>
    %15 = tpu.matmul %12, %11, %cst_11 {dimension_numbers = #tpu.dot_dimension_numbers<[1], [0], [0], [1], [0, 0, 1, 1], [], []>} : vector<8x128xf32>, vector<128x384xf32>, vector<8x384xf32> -> vector<8x384xf32>
    %c0_12 = arith.constant 0 : index
    %c0_13 = arith.constant 0 : index
    %16 = vector.load %arg6[%c0_12, %c0_13] : memref<1x384xf32, #tpu.memory_space<vmem>>, vector<1x384xf32>
    %17 = vector.broadcast %16 : vector<1x384xf32> to vector<8x384xf32>
    %18 = arith.addf %15, %17 : vector<8x384xf32>
    %19 = vector.extract_strided_slice %14 {offsets = [0, 0], sizes = [8, 128], strides = [1, 1]} : vector<8x384xf32> to vector<8x128xf32>
    %20 = vector.extract_strided_slice %18 {offsets = [0, 0], sizes = [8, 128], strides = [1, 1]} : vector<8x384xf32> to vector<8x128xf32>
    %21 = arith.addf %19, %20 : vector<8x128xf32>
    %22 = arith.negf %21 : vector<8x128xf32>
    %23 = math.exp %22 : vector<8x128xf32>
    %cst_14 = arith.constant 1.000000e+00 : f32
    %24 = vector.broadcast %cst_14 : f32 to vector<8x128xf32>
    %25 = arith.addf %24, %23 : vector<8x128xf32>
    %26 = arith.divf %24, %25 : vector<8x128xf32>
    %27 = vector.extract_strided_slice %14 {offsets = [0, 128], sizes = [8, 128], strides = [1, 1]} : vector<8x384xf32> to vector<8x128xf32>
    %28 = vector.extract_strided_slice %18 {offsets = [0, 128], sizes = [8, 128], strides = [1, 1]} : vector<8x384xf32> to vector<8x128xf32>
    %29 = arith.addf %27, %28 : vector<8x128xf32>
    %30 = arith.negf %29 : vector<8x128xf32>
    %31 = math.exp %30 : vector<8x128xf32>
    %cst_15 = arith.constant 1.000000e+00 : f32
    %32 = vector.broadcast %cst_15 : f32 to vector<8x128xf32>
    %33 = arith.addf %32, %31 : vector<8x128xf32>
    %34 = arith.divf %32, %33 : vector<8x128xf32>
    %35 = vector.extract_strided_slice %14 {offsets = [0, 256], sizes = [8, 128], strides = [1, 1]} : vector<8x384xf32> to vector<8x128xf32>
    %36 = vector.extract_strided_slice %18 {offsets = [0, 256], sizes = [8, 128], strides = [1, 1]} : vector<8x384xf32> to vector<8x128xf32>
    %37 = arith.mulf %26, %36 : vector<8x128xf32>
    %38 = arith.addf %35, %37 : vector<8x128xf32>
    %39 = math.tanh %38 : vector<8x128xf32>
    %cst_16 = arith.constant 1.000000e+00 : f32
    %40 = vector.broadcast %cst_16 : f32 to vector<8x128xf32>
    %41 = arith.subf %40, %34 : vector<8x128xf32>
    %42 = arith.mulf %41, %39 : vector<8x128xf32>
    %43 = arith.mulf %34, %12 : vector<8x128xf32>
    %44 = arith.addf %42, %43 : vector<8x128xf32>
    %45 = vector.extract_strided_slice %10 {offsets = [1, 0, 0], sizes = [1, 8, 384], strides = [1, 1, 1]} : vector<8x8x384xf32> to vector<1x8x384xf32>
    %46 = vector.shape_cast %45 : vector<1x8x384xf32> to vector<8x384xf32>
    %cst_17 = arith.constant dense<0.000000e+00> : vector<8x384xf32>
    %47 = tpu.matmul %44, %11, %cst_17 {dimension_numbers = #tpu.dot_dimension_numbers<[1], [0], [0], [1], [0, 0, 1, 1], [], []>} : vector<8x128xf32>, vector<128x384xf32>, vector<8x384xf32> -> vector<8x384xf32>
    %c0_18 = arith.constant 0 : index
    %c0_19 = arith.constant 0 : index
    %48 = vector.load %arg6[%c0_18, %c0_19] : memref<1x384xf32, #tpu.memory_space<vmem>>, vector<1x384xf32>
    %49 = vector.broadcast %48 : vector<1x384xf32> to vector<8x384xf32>
    %50 = arith.addf %47, %49 : vector<8x384xf32>
    %51 = vector.extract_strided_slice %46 {offsets = [0, 0], sizes = [8, 128], strides = [1, 1]} : vector<8x384xf32> to vector<8x128xf32>
    %52 = vector.extract_strided_slice %50 {offsets = [0, 0], sizes = [8, 128], strides = [1, 1]} : vector<8x384xf32> to vector<8x128xf32>
    %53 = arith.addf %51, %52 : vector<8x128xf32>
    %54 = arith.negf %53 : vector<8x128xf32>
    %55 = math.exp %54 : vector<8x128xf32>
    %cst_20 = arith.constant 1.000000e+00 : f32
    %56 = vector.broadcast %cst_20 : f32 to vector<8x128xf32>
    %57 = arith.addf %56, %55 : vector<8x128xf32>
    %58 = arith.divf %56, %57 : vector<8x128xf32>
    %59 = vector.extract_strided_slice %46 {offsets = [0, 128], sizes = [8, 128], strides = [1, 1]} : vector<8x384xf32> to vector<8x128xf32>
    %60 = vector.extract_strided_slice %50 {offsets = [0, 128], sizes = [8, 128], strides = [1, 1]} : vector<8x384xf32> to vector<8x128xf32>
    %61 = arith.addf %59, %60 : vector<8x128xf32>
    %62 = arith.negf %61 : vector<8x128xf32>
    %63 = math.exp %62 : vector<8x128xf32>
    %cst_21 = arith.constant 1.000000e+00 : f32
    %64 = vector.broadcast %cst_21 : f32 to vector<8x128xf32>
    %65 = arith.addf %64, %63 : vector<8x128xf32>
    %66 = arith.divf %64, %65 : vector<8x128xf32>
    %67 = vector.extract_strided_slice %46 {offsets = [0, 256], sizes = [8, 128], strides = [1, 1]} : vector<8x384xf32> to vector<8x128xf32>
    %68 = vector.extract_strided_slice %50 {offsets = [0, 256], sizes = [8, 128], strides = [1, 1]} : vector<8x384xf32> to vector<8x128xf32>
    %69 = arith.mulf %58, %68 : vector<8x128xf32>
    %70 = arith.addf %67, %69 : vector<8x128xf32>
    %71 = math.tanh %70 : vector<8x128xf32>
    %cst_22 = arith.constant 1.000000e+00 : f32
    %72 = vector.broadcast %cst_22 : f32 to vector<8x128xf32>
    %73 = arith.subf %72, %66 : vector<8x128xf32>
    %74 = arith.mulf %73, %71 : vector<8x128xf32>
    %75 = arith.mulf %66, %44 : vector<8x128xf32>
    %76 = arith.addf %74, %75 : vector<8x128xf32>
    %77 = vector.extract_strided_slice %10 {offsets = [2, 0, 0], sizes = [1, 8, 384], strides = [1, 1, 1]} : vector<8x8x384xf32> to vector<1x8x384xf32>
    %78 = vector.shape_cast %77 : vector<1x8x384xf32> to vector<8x384xf32>
    %cst_23 = arith.constant dense<0.000000e+00> : vector<8x384xf32>
    %79 = tpu.matmul %76, %11, %cst_23 {dimension_numbers = #tpu.dot_dimension_numbers<[1], [0], [0], [1], [0, 0, 1, 1], [], []>} : vector<8x128xf32>, vector<128x384xf32>, vector<8x384xf32> -> vector<8x384xf32>
    %c0_24 = arith.constant 0 : index
    %c0_25 = arith.constant 0 : index
    %80 = vector.load %arg6[%c0_24, %c0_25] : memref<1x384xf32, #tpu.memory_space<vmem>>, vector<1x384xf32>
    %81 = vector.broadcast %80 : vector<1x384xf32> to vector<8x384xf32>
    %82 = arith.addf %79, %81 : vector<8x384xf32>
    %83 = vector.extract_strided_slice %78 {offsets = [0, 0], sizes = [8, 128], strides = [1, 1]} : vector<8x384xf32> to vector<8x128xf32>
    %84 = vector.extract_strided_slice %82 {offsets = [0, 0], sizes = [8, 128], strides = [1, 1]} : vector<8x384xf32> to vector<8x128xf32>
    %85 = arith.addf %83, %84 : vector<8x128xf32>
    %86 = arith.negf %85 : vector<8x128xf32>
    %87 = math.exp %86 : vector<8x128xf32>
    %cst_26 = arith.constant 1.000000e+00 : f32
    %88 = vector.broadcast %cst_26 : f32 to vector<8x128xf32>
    %89 = arith.addf %88, %87 : vector<8x128xf32>
    %90 = arith.divf %88, %89 : vector<8x128xf32>
    %91 = vector.extract_strided_slice %78 {offsets = [0, 128], sizes = [8, 128], strides = [1, 1]} : vector<8x384xf32> to vector<8x128xf32>
    %92 = vector.extract_strided_slice %82 {offsets = [0, 128], sizes = [8, 128], strides = [1, 1]} : vector<8x384xf32> to vector<8x128xf32>
    %93 = arith.addf %91, %92 : vector<8x128xf32>
    %94 = arith.negf %93 : vector<8x128xf32>
    %95 = math.exp %94 : vector<8x128xf32>
    %cst_27 = arith.constant 1.000000e+00 : f32
    %96 = vector.broadcast %cst_27 : f32 to vector<8x128xf32>
    %97 = arith.addf %96, %95 : vector<8x128xf32>
    %98 = arith.divf %96, %97 : vector<8x128xf32>
    %99 = vector.extract_strided_slice %78 {offsets = [0, 256], sizes = [8, 128], strides = [1, 1]} : vector<8x384xf32> to vector<8x128xf32>
    %100 = vector.extract_strided_slice %82 {offsets = [0, 256], sizes = [8, 128], strides = [1, 1]} : vector<8x384xf32> to vector<8x128xf32>
    %101 = arith.mulf %90, %100 : vector<8x128xf32>
    %102 = arith.addf %99, %101 : vector<8x128xf32>
    %103 = math.tanh %102 : vector<8x128xf32>
    %cst_28 = arith.constant 1.000000e+00 : f32
    %104 = vector.broadcast %cst_28 : f32 to vector<8x128xf32>
    %105 = arith.subf %104, %98 : vector<8x128xf32>
    %106 = arith.mulf %105, %103 : vector<8x128xf32>
    %107 = arith.mulf %98, %76 : vector<8x128xf32>
    %108 = arith.addf %106, %107 : vector<8x128xf32>
    %109 = vector.extract_strided_slice %10 {offsets = [3, 0, 0], sizes = [1, 8, 384], strides = [1, 1, 1]} : vector<8x8x384xf32> to vector<1x8x384xf32>
    %110 = vector.shape_cast %109 : vector<1x8x384xf32> to vector<8x384xf32>
    %cst_29 = arith.constant dense<0.000000e+00> : vector<8x384xf32>
    %111 = tpu.matmul %108, %11, %cst_29 {dimension_numbers = #tpu.dot_dimension_numbers<[1], [0], [0], [1], [0, 0, 1, 1], [], []>} : vector<8x128xf32>, vector<128x384xf32>, vector<8x384xf32> -> vector<8x384xf32>
    %c0_30 = arith.constant 0 : index
    %c0_31 = arith.constant 0 : index
    %112 = vector.load %arg6[%c0_30, %c0_31] : memref<1x384xf32, #tpu.memory_space<vmem>>, vector<1x384xf32>
    %113 = vector.broadcast %112 : vector<1x384xf32> to vector<8x384xf32>
    %114 = arith.addf %111, %113 : vector<8x384xf32>
    %115 = vector.extract_strided_slice %110 {offsets = [0, 0], sizes = [8, 128], strides = [1, 1]} : vector<8x384xf32> to vector<8x128xf32>
    %116 = vector.extract_strided_slice %114 {offsets = [0, 0], sizes = [8, 128], strides = [1, 1]} : vector<8x384xf32> to vector<8x128xf32>
    %117 = arith.addf %115, %116 : vector<8x128xf32>
    %118 = arith.negf %117 : vector<8x128xf32>
    %119 = math.exp %118 : vector<8x128xf32>
    %cst_32 = arith.constant 1.000000e+00 : f32
    %120 = vector.broadcast %cst_32 : f32 to vector<8x128xf32>
    %121 = arith.addf %120, %119 : vector<8x128xf32>
    %122 = arith.divf %120, %121 : vector<8x128xf32>
    %123 = vector.extract_strided_slice %110 {offsets = [0, 128], sizes = [8, 128], strides = [1, 1]} : vector<8x384xf32> to vector<8x128xf32>
    %124 = vector.extract_strided_slice %114 {offsets = [0, 128], sizes = [8, 128], strides = [1, 1]} : vector<8x384xf32> to vector<8x128xf32>
    %125 = arith.addf %123, %124 : vector<8x128xf32>
    %126 = arith.negf %125 : vector<8x128xf32>
    %127 = math.exp %126 : vector<8x128xf32>
    %cst_33 = arith.constant 1.000000e+00 : f32
    %128 = vector.broadcast %cst_33 : f32 to vector<8x128xf32>
    %129 = arith.addf %128, %127 : vector<8x128xf32>
    %130 = arith.divf %128, %129 : vector<8x128xf32>
    %131 = vector.extract_strided_slice %110 {offsets = [0, 256], sizes = [8, 128], strides = [1, 1]} : vector<8x384xf32> to vector<8x128xf32>
    %132 = vector.extract_strided_slice %114 {offsets = [0, 256], sizes = [8, 128], strides = [1, 1]} : vector<8x384xf32> to vector<8x128xf32>
    %133 = arith.mulf %122, %132 : vector<8x128xf32>
    %134 = arith.addf %131, %133 : vector<8x128xf32>
    %135 = math.tanh %134 : vector<8x128xf32>
    %cst_34 = arith.constant 1.000000e+00 : f32
    %136 = vector.broadcast %cst_34 : f32 to vector<8x128xf32>
    %137 = arith.subf %136, %130 : vector<8x128xf32>
    %138 = arith.mulf %137, %135 : vector<8x128xf32>
    %139 = arith.mulf %130, %108 : vector<8x128xf32>
    %140 = arith.addf %138, %139 : vector<8x128xf32>
    %141 = vector.extract_strided_slice %10 {offsets = [4, 0, 0], sizes = [1, 8, 384], strides = [1, 1, 1]} : vector<8x8x384xf32> to vector<1x8x384xf32>
    %142 = vector.shape_cast %141 : vector<1x8x384xf32> to vector<8x384xf32>
    %cst_35 = arith.constant dense<0.000000e+00> : vector<8x384xf32>
    %143 = tpu.matmul %140, %11, %cst_35 {dimension_numbers = #tpu.dot_dimension_numbers<[1], [0], [0], [1], [0, 0, 1, 1], [], []>} : vector<8x128xf32>, vector<128x384xf32>, vector<8x384xf32> -> vector<8x384xf32>
    %c0_36 = arith.constant 0 : index
    %c0_37 = arith.constant 0 : index
    %144 = vector.load %arg6[%c0_36, %c0_37] : memref<1x384xf32, #tpu.memory_space<vmem>>, vector<1x384xf32>
    %145 = vector.broadcast %144 : vector<1x384xf32> to vector<8x384xf32>
    %146 = arith.addf %143, %145 : vector<8x384xf32>
    %147 = vector.extract_strided_slice %142 {offsets = [0, 0], sizes = [8, 128], strides = [1, 1]} : vector<8x384xf32> to vector<8x128xf32>
    %148 = vector.extract_strided_slice %146 {offsets = [0, 0], sizes = [8, 128], strides = [1, 1]} : vector<8x384xf32> to vector<8x128xf32>
    %149 = arith.addf %147, %148 : vector<8x128xf32>
    %150 = arith.negf %149 : vector<8x128xf32>
    %151 = math.exp %150 : vector<8x128xf32>
    %cst_38 = arith.constant 1.000000e+00 : f32
    %152 = vector.broadcast %cst_38 : f32 to vector<8x128xf32>
    %153 = arith.addf %152, %151 : vector<8x128xf32>
    %154 = arith.divf %152, %153 : vector<8x128xf32>
    %155 = vector.extract_strided_slice %142 {offsets = [0, 128], sizes = [8, 128], strides = [1, 1]} : vector<8x384xf32> to vector<8x128xf32>
    %156 = vector.extract_strided_slice %146 {offsets = [0, 128], sizes = [8, 128], strides = [1, 1]} : vector<8x384xf32> to vector<8x128xf32>
    %157 = arith.addf %155, %156 : vector<8x128xf32>
    %158 = arith.negf %157 : vector<8x128xf32>
    %159 = math.exp %158 : vector<8x128xf32>
    %cst_39 = arith.constant 1.000000e+00 : f32
    %160 = vector.broadcast %cst_39 : f32 to vector<8x128xf32>
    %161 = arith.addf %160, %159 : vector<8x128xf32>
    %162 = arith.divf %160, %161 : vector<8x128xf32>
    %163 = vector.extract_strided_slice %142 {offsets = [0, 256], sizes = [8, 128], strides = [1, 1]} : vector<8x384xf32> to vector<8x128xf32>
    %164 = vector.extract_strided_slice %146 {offsets = [0, 256], sizes = [8, 128], strides = [1, 1]} : vector<8x384xf32> to vector<8x128xf32>
    %165 = arith.mulf %154, %164 : vector<8x128xf32>
    %166 = arith.addf %163, %165 : vector<8x128xf32>
    %167 = math.tanh %166 : vector<8x128xf32>
    %cst_40 = arith.constant 1.000000e+00 : f32
    %168 = vector.broadcast %cst_40 : f32 to vector<8x128xf32>
    %169 = arith.subf %168, %162 : vector<8x128xf32>
    %170 = arith.mulf %169, %167 : vector<8x128xf32>
    %171 = arith.mulf %162, %140 : vector<8x128xf32>
    %172 = arith.addf %170, %171 : vector<8x128xf32>
    %173 = vector.extract_strided_slice %10 {offsets = [5, 0, 0], sizes = [1, 8, 384], strides = [1, 1, 1]} : vector<8x8x384xf32> to vector<1x8x384xf32>
    %174 = vector.shape_cast %173 : vector<1x8x384xf32> to vector<8x384xf32>
    %cst_41 = arith.constant dense<0.000000e+00> : vector<8x384xf32>
    %175 = tpu.matmul %172, %11, %cst_41 {dimension_numbers = #tpu.dot_dimension_numbers<[1], [0], [0], [1], [0, 0, 1, 1], [], []>} : vector<8x128xf32>, vector<128x384xf32>, vector<8x384xf32> -> vector<8x384xf32>
    %c0_42 = arith.constant 0 : index
    %c0_43 = arith.constant 0 : index
    %176 = vector.load %arg6[%c0_42, %c0_43] : memref<1x384xf32, #tpu.memory_space<vmem>>, vector<1x384xf32>
    %177 = vector.broadcast %176 : vector<1x384xf32> to vector<8x384xf32>
    %178 = arith.addf %175, %177 : vector<8x384xf32>
    %179 = vector.extract_strided_slice %174 {offsets = [0, 0], sizes = [8, 128], strides = [1, 1]} : vector<8x384xf32> to vector<8x128xf32>
    %180 = vector.extract_strided_slice %178 {offsets = [0, 0], sizes = [8, 128], strides = [1, 1]} : vector<8x384xf32> to vector<8x128xf32>
    %181 = arith.addf %179, %180 : vector<8x128xf32>
    %182 = arith.negf %181 : vector<8x128xf32>
    %183 = math.exp %182 : vector<8x128xf32>
    %cst_44 = arith.constant 1.000000e+00 : f32
    %184 = vector.broadcast %cst_44 : f32 to vector<8x128xf32>
    %185 = arith.addf %184, %183 : vector<8x128xf32>
    %186 = arith.divf %184, %185 : vector<8x128xf32>
    %187 = vector.extract_strided_slice %174 {offsets = [0, 128], sizes = [8, 128], strides = [1, 1]} : vector<8x384xf32> to vector<8x128xf32>
    %188 = vector.extract_strided_slice %178 {offsets = [0, 128], sizes = [8, 128], strides = [1, 1]} : vector<8x384xf32> to vector<8x128xf32>
    %189 = arith.addf %187, %188 : vector<8x128xf32>
    %190 = arith.negf %189 : vector<8x128xf32>
    %191 = math.exp %190 : vector<8x128xf32>
    %cst_45 = arith.constant 1.000000e+00 : f32
    %192 = vector.broadcast %cst_45 : f32 to vector<8x128xf32>
    %193 = arith.addf %192, %191 : vector<8x128xf32>
    %194 = arith.divf %192, %193 : vector<8x128xf32>
    %195 = vector.extract_strided_slice %174 {offsets = [0, 256], sizes = [8, 128], strides = [1, 1]} : vector<8x384xf32> to vector<8x128xf32>
    %196 = vector.extract_strided_slice %178 {offsets = [0, 256], sizes = [8, 128], strides = [1, 1]} : vector<8x384xf32> to vector<8x128xf32>
    %197 = arith.mulf %186, %196 : vector<8x128xf32>
    %198 = arith.addf %195, %197 : vector<8x128xf32>
    %199 = math.tanh %198 : vector<8x128xf32>
    %cst_46 = arith.constant 1.000000e+00 : f32
    %200 = vector.broadcast %cst_46 : f32 to vector<8x128xf32>
    %201 = arith.subf %200, %194 : vector<8x128xf32>
    %202 = arith.mulf %201, %199 : vector<8x128xf32>
    %203 = arith.mulf %194, %172 : vector<8x128xf32>
    %204 = arith.addf %202, %203 : vector<8x128xf32>
    %205 = vector.extract_strided_slice %10 {offsets = [6, 0, 0], sizes = [1, 8, 384], strides = [1, 1, 1]} : vector<8x8x384xf32> to vector<1x8x384xf32>
    %206 = vector.shape_cast %205 : vector<1x8x384xf32> to vector<8x384xf32>
    %cst_47 = arith.constant dense<0.000000e+00> : vector<8x384xf32>
    %207 = tpu.matmul %204, %11, %cst_47 {dimension_numbers = #tpu.dot_dimension_numbers<[1], [0], [0], [1], [0, 0, 1, 1], [], []>} : vector<8x128xf32>, vector<128x384xf32>, vector<8x384xf32> -> vector<8x384xf32>
    %c0_48 = arith.constant 0 : index
    %c0_49 = arith.constant 0 : index
    %208 = vector.load %arg6[%c0_48, %c0_49] : memref<1x384xf32, #tpu.memory_space<vmem>>, vector<1x384xf32>
    %209 = vector.broadcast %208 : vector<1x384xf32> to vector<8x384xf32>
    %210 = arith.addf %207, %209 : vector<8x384xf32>
    %211 = vector.extract_strided_slice %206 {offsets = [0, 0], sizes = [8, 128], strides = [1, 1]} : vector<8x384xf32> to vector<8x128xf32>
    %212 = vector.extract_strided_slice %210 {offsets = [0, 0], sizes = [8, 128], strides = [1, 1]} : vector<8x384xf32> to vector<8x128xf32>
    %213 = arith.addf %211, %212 : vector<8x128xf32>
    %214 = arith.negf %213 : vector<8x128xf32>
    %215 = math.exp %214 : vector<8x128xf32>
    %cst_50 = arith.constant 1.000000e+00 : f32
    %216 = vector.broadcast %cst_50 : f32 to vector<8x128xf32>
    %217 = arith.addf %216, %215 : vector<8x128xf32>
    %218 = arith.divf %216, %217 : vector<8x128xf32>
    %219 = vector.extract_strided_slice %206 {offsets = [0, 128], sizes = [8, 128], strides = [1, 1]} : vector<8x384xf32> to vector<8x128xf32>
    %220 = vector.extract_strided_slice %210 {offsets = [0, 128], sizes = [8, 128], strides = [1, 1]} : vector<8x384xf32> to vector<8x128xf32>
    %221 = arith.addf %219, %220 : vector<8x128xf32>
    %222 = arith.negf %221 : vector<8x128xf32>
    %223 = math.exp %222 : vector<8x128xf32>
    %cst_51 = arith.constant 1.000000e+00 : f32
    %224 = vector.broadcast %cst_51 : f32 to vector<8x128xf32>
    %225 = arith.addf %224, %223 : vector<8x128xf32>
    %226 = arith.divf %224, %225 : vector<8x128xf32>
    %227 = vector.extract_strided_slice %206 {offsets = [0, 256], sizes = [8, 128], strides = [1, 1]} : vector<8x384xf32> to vector<8x128xf32>
    %228 = vector.extract_strided_slice %210 {offsets = [0, 256], sizes = [8, 128], strides = [1, 1]} : vector<8x384xf32> to vector<8x128xf32>
    %229 = arith.mulf %218, %228 : vector<8x128xf32>
    %230 = arith.addf %227, %229 : vector<8x128xf32>
    %231 = math.tanh %230 : vector<8x128xf32>
    %cst_52 = arith.constant 1.000000e+00 : f32
    %232 = vector.broadcast %cst_52 : f32 to vector<8x128xf32>
    %233 = arith.subf %232, %226 : vector<8x128xf32>
    %234 = arith.mulf %233, %231 : vector<8x128xf32>
    %235 = arith.mulf %226, %204 : vector<8x128xf32>
    %236 = arith.addf %234, %235 : vector<8x128xf32>
    %237 = vector.extract_strided_slice %10 {offsets = [7, 0, 0], sizes = [1, 8, 384], strides = [1, 1, 1]} : vector<8x8x384xf32> to vector<1x8x384xf32>
    %238 = vector.shape_cast %237 : vector<1x8x384xf32> to vector<8x384xf32>
    %cst_53 = arith.constant dense<0.000000e+00> : vector<8x384xf32>
    %239 = tpu.matmul %236, %11, %cst_53 {dimension_numbers = #tpu.dot_dimension_numbers<[1], [0], [0], [1], [0, 0, 1, 1], [], []>} : vector<8x128xf32>, vector<128x384xf32>, vector<8x384xf32> -> vector<8x384xf32>
    %c0_54 = arith.constant 0 : index
    %c0_55 = arith.constant 0 : index
    %240 = vector.load %arg6[%c0_54, %c0_55] : memref<1x384xf32, #tpu.memory_space<vmem>>, vector<1x384xf32>
    %241 = vector.broadcast %240 : vector<1x384xf32> to vector<8x384xf32>
    %242 = arith.addf %239, %241 : vector<8x384xf32>
    %243 = vector.extract_strided_slice %238 {offsets = [0, 0], sizes = [8, 128], strides = [1, 1]} : vector<8x384xf32> to vector<8x128xf32>
    %244 = vector.extract_strided_slice %242 {offsets = [0, 0], sizes = [8, 128], strides = [1, 1]} : vector<8x384xf32> to vector<8x128xf32>
    %245 = arith.addf %243, %244 : vector<8x128xf32>
    %246 = arith.negf %245 : vector<8x128xf32>
    %247 = math.exp %246 : vector<8x128xf32>
    %cst_56 = arith.constant 1.000000e+00 : f32
    %248 = vector.broadcast %cst_56 : f32 to vector<8x128xf32>
    %249 = arith.addf %248, %247 : vector<8x128xf32>
    %250 = arith.divf %248, %249 : vector<8x128xf32>
    %251 = vector.extract_strided_slice %238 {offsets = [0, 128], sizes = [8, 128], strides = [1, 1]} : vector<8x384xf32> to vector<8x128xf32>
    %252 = vector.extract_strided_slice %242 {offsets = [0, 128], sizes = [8, 128], strides = [1, 1]} : vector<8x384xf32> to vector<8x128xf32>
    %253 = arith.addf %251, %252 : vector<8x128xf32>
    %254 = arith.negf %253 : vector<8x128xf32>
    %255 = math.exp %254 : vector<8x128xf32>
    %cst_57 = arith.constant 1.000000e+00 : f32
    %256 = vector.broadcast %cst_57 : f32 to vector<8x128xf32>
    %257 = arith.addf %256, %255 : vector<8x128xf32>
    %258 = arith.divf %256, %257 : vector<8x128xf32>
    %259 = vector.extract_strided_slice %238 {offsets = [0, 256], sizes = [8, 128], strides = [1, 1]} : vector<8x384xf32> to vector<8x128xf32>
    %260 = vector.extract_strided_slice %242 {offsets = [0, 256], sizes = [8, 128], strides = [1, 1]} : vector<8x384xf32> to vector<8x128xf32>
    %261 = arith.mulf %250, %260 : vector<8x128xf32>
    %262 = arith.addf %259, %261 : vector<8x128xf32>
    %263 = math.tanh %262 : vector<8x128xf32>
    %cst_58 = arith.constant 1.000000e+00 : f32
    %264 = vector.broadcast %cst_58 : f32 to vector<8x128xf32>
    %265 = arith.subf %264, %258 : vector<8x128xf32>
    %266 = arith.mulf %265, %263 : vector<8x128xf32>
    %267 = arith.mulf %258, %236 : vector<8x128xf32>
    %268 = arith.addf %266, %267 : vector<8x128xf32>
    %c0_59 = arith.constant 0 : index
    %c0_60 = arith.constant 0 : index
    %269 = vector.load %arg10[%c0_59, %c0_60] : memref<8x128xf32, #tpu.memory_space<vmem>>, vector<8x128xf32>
    tpu.vector_store %arg10[%c0_59, %c0_60], %268 {strides = array<i32>} : memref<8x128xf32, #tpu.memory_space<vmem>>, vector<8x128xf32>,
    %c0_i32_61 = arith.constant 0 : i32
    %270 = arith.cmpi eq, %arg1, %c0_i32_61 : i32
    %271 = arith.extui %270 : i1 to i32
    %c0_i32_62 = arith.constant 0 : i32
    %272 = arith.cmpi ne, %271, %c0_i32_62 : i32
    scf.if %272 {
      %c0_63 = arith.constant 0 : index
      %c0_64 = arith.constant 0 : index
      %273 = vector.load %arg7[%c0_63, %c0_64] : memref<128x128xf32, #tpu.memory_space<vmem>>, vector<128x128xf32>
      %cst_65 = arith.constant dense<0.000000e+00> : vector<8x128xf32>
      %274 = tpu.matmul %268, %273, %cst_65 {dimension_numbers = #tpu.dot_dimension_numbers<[1], [0], [0], [1], [0, 0, 1, 1], [], []>} : vector<8x128xf32>, vector<128x128xf32>, vector<8x128xf32> -> vector<8x128xf32>
      %c0_66 = arith.constant 0 : index
      %c0_67 = arith.constant 0 : index
      %275 = vector.load %arg8[%c0_66, %c0_67] : memref<1x128xf32, #tpu.memory_space<vmem>>, vector<1x128xf32>
      %276 = vector.broadcast %275 : vector<1x128xf32> to vector<8x128xf32>
      %277 = arith.addf %274, %276 : vector<8x128xf32>
      %c0_68 = arith.constant 0 : index
      %c0_69 = arith.constant 0 : index
      %278 = vector.load %arg9[%c0_68, %c0_69] : memref<8x128xf32, #tpu.memory_space<vmem>>, vector<8x128xf32>
      tpu.vector_store %arg9[%c0_68, %c0_69], %277 {strides = array<i32>} : memref<8x128xf32, #tpu.memory_space<vmem>>, vector<8x128xf32>,
    } else {
    }
    return
  }
  func.func @transform_0(%arg0: i32, %arg1: i32) -> (i32, i32, i32) {
    %c0_i32 = arith.constant 0 : i32
    %c0_i32_0 = arith.constant 0 : i32
    return %arg1, %arg0, %c0_i32 : i32, i32, i32
  }
  func.func @transform_1(%arg0: i32, %arg1: i32) -> (i32, i32) {
    %c0_i32 = arith.constant 0 : i32
    %c0_i32_0 = arith.constant 0 : i32
    %c0_i32_1 = arith.constant 0 : i32
    return %c0_i32, %c0_i32_0 : i32, i32
  }
  func.func @transform_2(%arg0: i32, %arg1: i32) -> (i32, i32) {
    %c0_i32 = arith.constant 0 : i32
    %c0_i32_0 = arith.constant 0 : i32
    %c0_i32_1 = arith.constant 0 : i32
    return %c0_i32, %c0_i32_0 : i32, i32
  }
  func.func @transform_3(%arg0: i32, %arg1: i32) -> (i32, i32) {
    %c0_i32 = arith.constant 0 : i32
    %c0_i32_0 = arith.constant 0 : i32
    %c0_i32_1 = arith.constant 0 : i32
    return %c0_i32, %c0_i32_0 : i32, i32
  }
  func.func @transform_4(%arg0: i32, %arg1: i32) -> (i32, i32) {
    %c0_i32 = arith.constant 0 : i32
    %c0_i32_0 = arith.constant 0 : i32
    %c0_i32_1 = arith.constant 0 : i32
    return %c0_i32, %c0_i32_0 : i32, i32
  }
  func.func @transform_5(%arg0: i32, %arg1: i32) -> (i32, i32) {
    %c0_i32 = arith.constant 0 : i32
    %c0_i32_0 = arith.constant 0 : i32
    %c0_i32_1 = arith.constant 0 : i32
    return %c0_i32, %c0_i32_0 : i32, i32
  }
  func.func @transform_6(%arg0: i32, %arg1: i32) -> (i32, i32) {
    %c0_i32 = arith.constant 0 : i32
    %c0_i32_0 = arith.constant 0 : i32
    %c0_i32_1 = arith.constant 0 : i32
    return %c0_i32, %c0_i32_0 : i32, i32
  }
  func.func @transform_7(%arg0: i32, %arg1: i32) -> (i32, i32) {
    %c0_i32 = arith.constant 0 : i32
    %c0_i32_0 = arith.constant 0 : i32
    return %arg0, %c0_i32 : i32, i32
  }
}

</mosaic_0001>

<llo_original>
// kernel: tpu_custom_call.1
$region0: #{tpu_custom_call.1}
  #allocation0 [shape = 'u32[]', space=smem, size = 0x4, offset = 0x4, fixed_abs, tag = 'smem constant byte address 0x4 - core index']
  #allocation1 [shape = 'u32[144,128]{1,0:T(1,128)}', space=vmem, size = 0x12000, scoped, tag = 'internal scratch']
  #allocation2 [shape = 'f32[8,128]{1,0:T(8,128)}', space=vmem, size = 0x1000, scoped, tag = 'scratch operand']
  %s0 = inlined_call_operand.hbm [shape: f32[8,8,128], index: 0, kind: input, shape index: {}]
  %s1 = inlined_call_operand.hbm [shape: f32[128,384], index: 1, kind: input, shape index: {}]
  %s2 = inlined_call_operand.vmem [shape: f32[1,384], index: 2, kind: input, shape index: {}]
  %s3 = inlined_call_operand.hbm [shape: f32[128,384], index: 3, kind: input, shape index: {}]
  %s4 = inlined_call_operand.vmem [shape: f32[1,384], index: 4, kind: input, shape index: {}]
  %s5 = inlined_call_operand.hbm [shape: f32[128,128], index: 5, kind: input, shape index: {}]
  %s6 = inlined_call_operand.vmem [shape: f32[1,128], index: 6, kind: input, shape index: {}]
  %s7 = inlined_call_operand.hbm [shape: f32[8,128], index: 7, kind: output, shape index: {}]
  %s8 = sld [smem:[#allocation0]]
  $region62: #{tpu_custom_call.1} parent=0
    _
  %s10 = ssub.s32 1, %s8
  %s11 = scalar_select 0, %s10, %s8
  $region1: #{tpu_custom_call.1} parent=0
    #allocation3 [shape = 'u8[32768]{0}', space=vmem, size = 0x8000, scoped, tag = 'input window, operand 0, single buffered']
    #allocation4 [shape = 's32[1]{0}', space=sflag, size = 0x4, scoped, tag = 'scoped memory for tpu_custom_call.1']
    #allocation5 [shape = 's32[1]{0}', space=sflag, size = 0x4, scoped, tag = 'scoped memory for tpu_custom_call.1']
    #allocation6 [shape = 'u8[196608]{0}', space=vmem, size = 0x30000, scoped, tag = 'input window, operand 1, single buffered']
    #allocation7 [shape = 's32[1]{0}', space=sflag, size = 0x4, scoped, tag = 'scoped memory for tpu_custom_call.1']
    #allocation8 [shape = 'u8[196608]{0}', space=vmem, size = 0x30000, scoped, tag = 'input window, operand 3, single buffered']
    #allocation9 [shape = 'u8[65536]{0}', space=vmem, size = 0x10000, scoped, tag = 'input window, operand 5, single buffered']
    #allocation10 [shape = 's32[1]{0}', space=sflag, size = 0x4, scoped, tag = 'scoped memory for tpu_custom_call.1']
    #allocation11 [shape = 'u8[4096]{0}', space=vmem, size = 0x1000, scoped, tag = 'output window, operand 0, single buffered']
    %12 = vsyncpa [#allocation4], 0
    %13 = vsyncpa [#allocation7], 0
    %14 = vsyncpa [#allocation10], 0
    %15 = vsyncpa [#allocation5], 0
    // Predicated region
    $region2: #{tpu_custom_call.1} parent=1 // pred_check
      _
    $region3: #{tpu_custom_call.1} parent=1 // pred_check_branch
      %17 = sbr.rel (0) target = $region5
    $region4: #{tpu_custom_call.1} parent=1 // pred_region
      %s19 = ssub.s32 1024, 1024
      %20 = vsyncadd [#allocation4], %s19
      %s21 = sshll.u32 [#allocation3], 4
      %s22 = int_to_ptr.vmem [resolvable:$true] %s21
      %27 = dma.hbm_to_vmem [thread:$0]  %s0, 1024, %s22, [#allocation4], 128, 128, 8
    $region5: #{tpu_custom_call.1} parent=1 // pred_fallthru
      _
    // Predicated region
    $region6: #{tpu_custom_call.1} parent=1 // pred_check
      _
    $region7: #{tpu_custom_call.1} parent=1 // pred_check_branch
      %29 = sbr.rel (0) target = $region9
    $region8: #{tpu_custom_call.1} parent=1 // pred_region
      %s31 = ssub.s32 6144, 6144
      %32 = vsyncadd [#allocation7], %s31
      %s33 = sshll.u32 [#allocation6], 4
      %s34 = int_to_ptr.vmem [resolvable:$true] %s33
      %39 = dma.hbm_to_vmem [thread:$0]  %s1, 6144, %s34, [#allocation7], 384, 384, 24
    $region9: #{tpu_custom_call.1} parent=1 // pred_fallthru
      _
    // Predicated region
    $region10: #{tpu_custom_call.1} parent=1 // pred_check
      _
    $region11: #{tpu_custom_call.1} parent=1 // pred_check_branch
      %41 = sbr.rel (0) target = $region13
    $region12: #{tpu_custom_call.1} parent=1 // pred_region
      _
    $region13: #{tpu_custom_call.1} parent=1 // pred_fallthru
      _
    // Predicated region
    $region14: #{tpu_custom_call.1} parent=1 // pred_check
      _
    $region15: #{tpu_custom_call.1} parent=1 // pred_check_branch
      %43 = sbr.rel (0) target = $region17
    $region16: #{tpu_custom_call.1} parent=1 // pred_region
      %s45 = ssub.s32 6144, 6144
      %46 = vsyncadd [#allocation7], %s45
      %s47 = sshll.u32 [#allocation8], 4
      %s48 = int_to_ptr.vmem [resolvable:$true] %s47
      %53 = dma.hbm_to_vmem [thread:$0]  %s3, 6144, %s48, [#allocation7], 384, 384, 24
    $region17: #{tpu_custom_call.1} parent=1 // pred_fallthru
      _
    // Predicated region
    $region18: #{tpu_custom_call.1} parent=1 // pred_check
      _
    $region19: #{tpu_custom_call.1} parent=1 // pred_check_branch
      %55 = sbr.rel (0) target = $region21
    $region20: #{tpu_custom_call.1} parent=1 // pred_region
      _
    $region21: #{tpu_custom_call.1} parent=1 // pred_fallthru
      _
    // Predicated region
    $region22: #{tpu_custom_call.1} parent=1 // pred_check
      _
    $region23: #{tpu_custom_call.1} parent=1 // pred_check_branch
      %57 = sbr.rel (0) target = $region25
    $region24: #{tpu_custom_call.1} parent=1 // pred_region
      %s59 = ssub.s32 2048, 2048
      %60 = vsyncadd [#allocation10], %s59
      %s61 = sshll.u32 [#allocation9], 4
      %s62 = int_to_ptr.vmem [resolvable:$true] %s61
      %67 = dma.hbm_to_vmem [thread:$0]  %s5, 2048, %s62, [#allocation10], 128, 128, 8
    $region25: #{tpu_custom_call.1} parent=1 // pred_fallthru
      _
    // Predicated region
    $region26: #{tpu_custom_call.1} parent=1 // pred_check
      _
    $region27: #{tpu_custom_call.1} parent=1 // pred_check_branch
      %69 = sbr.rel (0) target = $region29
    $region28: #{tpu_custom_call.1} parent=1 // pred_region
      _
    $region29: #{tpu_custom_call.1} parent=1 // pred_fallthru
      _
    // Predicated region
    $region30: #{tpu_custom_call.1} parent=1 // pred_check
      _
    $region31: #{tpu_custom_call.1} parent=1 // pred_check_branch
      %71 = sbr.rel (0) target = $region33
    $region32: #{tpu_custom_call.1} parent=1 // pred_region
      %72 = dma.done [#allocation4], 1024
    $region33: #{tpu_custom_call.1} parent=1 // pred_fallthru
      _
    // Predicated region
    $region34: #{tpu_custom_call.1} parent=1 // pred_check
      _
    $region35: #{tpu_custom_call.1} parent=1 // pred_check_branch
      %74 = sbr.rel (0) target = $region37
    $region36: #{tpu_custom_call.1} parent=1 // pred_region
      %75 = dma.done [#allocation7], 6144
    $region37: #{tpu_custom_call.1} parent=1 // pred_fallthru
      _
    // Predicated region
    $region38: #{tpu_custom_call.1} parent=1 // pred_check
      _
    $region39: #{tpu_custom_call.1} parent=1 // pred_check_branch
      %77 = sbr.rel (0) target = $region41
    $region40: #{tpu_custom_call.1} parent=1 // pred_region
      %78 = dma.done [#allocation7], 6144
    $region41: #{tpu_custom_call.1} parent=1 // pred_fallthru
      _
    // Predicated region
    $region42: #{tpu_custom_call.1} parent=1 // pred_check
      _
    $region43: #{tpu_custom_call.1} parent=1 // pred_check_branch
      %80 = sbr.rel (0) target = $region45
    $region44: #{tpu_custom_call.1} parent=1 // pred_region
      %81 = dma.done [#allocation10], 2048
    $region45: #{tpu_custom_call.1} parent=1 // pred_fallthru
      _
    %p82 = scmp.eq.s32.totalorder 0, 0
    // Predicated region
    $region46: #{tpu_custom_call.1} parent=1 // pred_check
      %p83 = pneg %p82
    $region47: #{tpu_custom_call.1} parent=1 // pred_check_branch
      %85 = sbr.rel (%p83) target = $region49
    $region48: #{tpu_custom_call.1} parent=1 // pred_region
      %86 = vst [vmem:[#allocation2] sm:$0xff] 0.0
    $region49: #{tpu_custom_call.1} parent=1 // pred_fallthru
      _
    %v87 = vld [vmem:[#allocation3] sm:$0xff]
    %v88 = vld [vmem:[#allocation3 + $0x8] sm:$0xff]
    %v89 = vld [vmem:[#allocation3 + $0x10] sm:$0xff]
    %v90 = vld [vmem:[#allocation3 + $0x18] sm:$0xff]
    %v91 = vld [vmem:[#allocation3 + $0x20] sm:$0xff]
    %v92 = vld [vmem:[#allocation3 + $0x28] sm:$0xff]
    %v93 = vld [vmem:[#allocation3 + $0x30] sm:$0xff]
    %v94 = vld [vmem:[#allocation3 + $0x38] sm:$0xff]
    %v95 = vld [vmem:[#allocation6] sm:$0xff]
    %v96 = vld [vmem:[#allocation6 + $0x8] sm:$0xff]
    %v97 = vld [vmem:[#allocation6 + $0x10] sm:$0xff]
    %v98 = vld [vmem:[#allocation6 + $0x18] sm:$0xff]
    %v99 = vld [vmem:[#allocation6 + $0x20] sm:$0xff]
    %v100 = vld [vmem:[#allocation6 + $0x28] sm:$0xff]
    %v101 = vld [vmem:[#allocation6 + $0x30] sm:$0xff]
    %v102 = vld [vmem:[#allocation6 + $0x38] sm:$0xff]
    %v103 = vld [vmem:[#allocation6 + $0x40] sm:$0xff]
    %v104 = vld [vmem:[#allocation6 + $0x48] sm:$0xff]
    %v105 = vld [vmem:[#allocation6 + $0x50] sm:$0xff]
    %v106 = vld [vmem:[#allocation6 + $0x58] sm:$0xff]
    %v107 = vld [vmem:[#allocation6 + $0x60] sm:$0xff]
    %v108 = vld [vmem:[#allocation6 + $0x68] sm:$0xff]
    %v109 = vld [vmem:[#allocation6 + $0x70] sm:$0xff]
    %v110 = vld [vmem:[#allocation6 + $0x78] sm:$0xff]
    %v111 = vld [vmem:[#allocation6 + $0x80] sm:$0xff]
    %v112 = vld [vmem:[#allocation6 + $0x88] sm:$0xff]
    %v113 = vld [vmem:[#allocation6 + $0x90] sm:$0xff]
    %v114 = vld [vmem:[#allocation6 + $0x98] sm:$0xff]
    %v115 = vld [vmem:[#allocation6 + $0xa0] sm:$0xff]
    %v116 = vld [vmem:[#allocation6 + $0xa8] sm:$0xff]
    %v117 = vld [vmem:[#allocation6 + $0xb0] sm:$0xff]
    %v118 = vld [vmem:[#allocation6 + $0xb8] sm:$0xff]
    %v119 = vld [vmem:[#allocation6 + $0xc0] sm:$0xff]
    %v120 = vld [vmem:[#allocation6 + $0xc8] sm:$0xff]
    %v121 = vld [vmem:[#allocation6 + $0xd0] sm:$0xff]
    %v122 = vld [vmem:[#allocation6 + $0xd8] sm:$0xff]
    %v123 = vld [vmem:[#allocation6 + $0xe0] sm:$0xff]
    %v124 = vld [vmem:[#allocation6 + $0xe8] sm:$0xff]
    %v125 = vld [vmem:[#allocation6 + $0xf0] sm:$0xff]
    %v126 = vld [vmem:[#allocation6 + $0xf8] sm:$0xff]
    %v127 = vld [vmem:[#allocation6 + $0x100] sm:$0xff]
    %v128 = vld [vmem:[#allocation6 + $0x108] sm:$0xff]
    %v129 = vld [vmem:[#allocation6 + $0x110] sm:$0xff]
    %v130 = vld [vmem:[#allocation6 + $0x118] sm:$0xff]
    %v131 = vld [vmem:[#allocation6 + $0x120] sm:$0xff]
    %v132 = vld [vmem:[#allocation6 + $0x128] sm:$0xff]
    %v133 = vld [vmem:[#allocation6 + $0x130] sm:$0xff]
    %v134 = vld [vmem:[#allocation6 + $0x138] sm:$0xff]
    %v135 = vld [vmem:[#allocation6 + $0x140] sm:$0xff]
    %v136 = vld [vmem:[#allocation6 + $0x148] sm:$0xff]
    %v137 = vld [vmem:[#allocation6 + $0x150] sm:$0xff]
    %v138 = vld [vmem:[#allocation6 + $0x158] sm:$0xff]
    %v139 = vld [vmem:[#allocation6 + $0x160] sm:$0xff]
    %v140 = vld [vmem:[#allocation6 + $0x168] sm:$0xff]
    %v141 = vld [vmem:[#allocation6 + $0x170] sm:$0xff]
    %v142 = vld [vmem:[#allocation6 + $0x178] sm:$0xff]
    %v143 = vld [vmem:[%s2] sm:$0x7]
    %v145 = vlaneseq
    %v146 = vshrl.u32 %v145, 7
    %v147 = vsub.s32 0, %v146
    %v148 = vrot.slane %v143, %v147
    %v149 = vlaneseq
    %v150 = vshrl.u32 %v149, 7
    %v151 = vsub.s32 1, %v150
    %v152 = vrot.slane %v143, %v151
    %v153 = vlaneseq
    %v154 = vshrl.u32 %v153, 7
    %v155 = vsub.s32 2, %v154
    %v156 = vrot.slane %v143, %v155
    %160 = vmatprep.subr.mxu0 %v141
    %161 = vmatpush1.msra.mxu0 %v140
    %162 = vmatprep.subr.mxu0 %v138
    %163 = vmatpush1.msra.mxu0 %v137
    %164 = vmatprep.subr.mxu0 %v135
    %165 = vmatpush1.msra.mxu0 %v134
    %166 = vmatprep.subr.mxu0 %v132
    %167 = vmatpush1.msra.mxu0 %v131
    %168 = vmatprep.subr.mxu0 %v129
    %169 = vmatpush1.msra.mxu0 %v128
    %170 = vmatprep.subr.mxu0 %v126
    %171 = vmatpush1.msra.mxu0 %v125
    %172 = vmatprep.subr.mxu0 %v123
    %173 = vmatpush1.msra.mxu0 %v122
    %174 = vmatprep.subr.mxu0 %v120
    %175 = vmatpush1.msra.mxu0 %v119
    %176 = vmatprep.subr.mxu0 %v117
    %177 = vmatpush1.msra.mxu0 %v116
    %178 = vmatprep.subr.mxu0 %v114
    %179 = vmatpush1.msra.mxu0 %v113
    %180 = vmatprep.subr.mxu0 %v111
    %181 = vmatpush1.msra.mxu0 %v110
    %182 = vmatprep.subr.mxu0 %v108
    %183 = vmatpush1.msra.mxu0 %v107
    %184 = vmatprep.subr.mxu0 %v105
    %185 = vmatpush1.msra.mxu0 %v104
    %186 = vmatprep.subr.mxu0 %v102
    %187 = vmatpush1.msra.mxu0 %v101
    %188 = vmatprep.subr.mxu0 %v99
    %189 = vmatpush1.msra.mxu0 %v98
    %190 = vmatprep.subr.mxu0 %v96
    %191 = vmatpush1.msra.mxu0 %v95
    %192 = vmatprep.subr.mxu0 0.0
    %193 = vmatpush2.msra.mxu0 0.0
    %194 = vmatprep.subr.mxu0 0.0
    %195 = vmatpush2.msra.mxu0 0.0
    %196 = vmatprep.subr.mxu0 0.0
    %197 = vmatpush2.msra.mxu0 0.0
    %198 = vmatprep.subr.mxu0 0.0
    %199 = vmatpush2.msra.mxu0 0.0
    %200 = vmatprep.subr.mxu0 0.0
    %201 = vmatpush2.msra.mxu0 0.0
    %202 = vmatprep.subr.mxu0 0.0
    %203 = vmatpush2.msra.mxu0 0.0
    %204 = vmatprep.subr.mxu0 0.0
    %205 = vmatpush2.msra.mxu0 0.0
    %206 = vmatprep.subr.mxu0 0.0
    %207 = vmatpush2.msra.mxu0 0.0
    %208 = vmatprep.subr.mxu0 0.0
    %209 = vmatpush2.msra.mxu0 0.0
    %210 = vmatprep.subr.mxu0 0.0
    %211 = vmatpush2.msra.mxu0 0.0
    %212 = vmatprep.subr.mxu0 0.0
    %213 = vmatpush2.msra.mxu0 0.0
    %214 = vmatprep.subr.mxu0 0.0
    %215 = vmatpush2.msra.mxu0 0.0
    %216 = vmatprep.subr.mxu0 0.0
    %217 = vmatpush2.msra.mxu0 0.0
    %218 = vmatprep.subr.mxu0 0.0
    %219 = vmatpush2.msra.mxu0 0.0
    %220 = vmatprep.subr.mxu0 0.0
    %221 = vmatpush2.msra.mxu0 0.0
    %222 = vmatprep.subr.mxu0 0.0
    %223 = vmatpush2.msra.mxu0 0.0
    %224 = vmatprep.mubr.f32.mxu0 0.0
    %225 = vmatmul.mubr.f32.gmra.mxu0 %v87
    %v226 = vpop.f32.mrf.mxu0
    %v227 = vadd.f32 %v148, %v226
    %v228 = vpop.f32.mrf.mxu0
    %v229 = vadd.f32 %v152, %v228
    %230 = vmatprep.mubr.f32.mxu0 0.0
    %231 = vmatmul.mubr.f32.gmra.mxu0 %v88
    %v232 = vpop.f32.mrf.mxu0
    %v233 = vadd.f32 %v148, %v232
    %v234 = vpop.f32.mrf.mxu0
    %v235 = vadd.f32 %v152, %v234
    %236 = vmatprep.mubr.f32.mxu0 0.0
    %237 = vmatmul.mubr.f32.gmra.mxu0 %v89
    %v238 = vpop.f32.mrf.mxu0
    %v239 = vadd.f32 %v148, %v238
    %v240 = vpop.f32.mrf.mxu0
    %v241 = vadd.f32 %v152, %v240
    %242 = vmatprep.mubr.f32.mxu0 0.0
    %243 = vmatmul.mubr.f32.gmra.mxu0 %v90
    %v244 = vpop.f32.mrf.mxu0
    %v245 = vadd.f32 %v148, %v244
    %v246 = vpop.f32.mrf.mxu0
    %v247 = vadd.f32 %v152, %v246
    %248 = vmatprep.mubr.f32.mxu0 0.0
    %249 = vmatmul.mubr.f32.gmra.mxu0 %v91
    %v250 = vpop.f32.mrf.mxu0
    %v251 = vadd.f32 %v148, %v250
    %v252 = vpop.f32.mrf.mxu0
    %v253 = vadd.f32 %v152, %v252
    %254 = vmatprep.mubr.f32.mxu0 0.0
    %255 = vmatmul.mubr.f32.gmra.mxu0 %v92
    %v256 = vpop.f32.mrf.mxu0
    %v257 = vadd.f32 %v148, %v256
    %v258 = vpop.f32.mrf.mxu0
    %v259 = vadd.f32 %v152, %v258
    %260 = vmatprep.mubr.f32.mxu0 0.0
    %261 = vmatmul.mubr.f32.gmra.mxu0 %v93
    %v262 = vpop.f32.mrf.mxu0
    %v263 = vadd.f32 %v148, %v262
    %v264 = vpop.f32.mrf.mxu0
    %v265 = vadd.f32 %v152, %v264
    %266 = vmatprep.mubr.f32.mxu0 0.0
    %267 = vmatmul.mubr.f32.gmra.mxu0 %v94
    %v268 = vpop.f32.mrf.mxu0
    %v269 = vadd.f32 %v148, %v268
    %v270 = vpop.f32.mrf.mxu0
    %v271 = vadd.f32 %v152, %v270
    %272 = vdwg.mxu0
    %273 = vmatprep.subr.mxu0 0.0
    %274 = vmatpush1.msra.mxu0 %v142
    %275 = vmatprep.subr.mxu0 0.0
    %276 = vmatpush1.msra.mxu0 %v139
    %277 = vmatprep.subr.mxu0 0.0
    %278 = vmatpush1.msra.mxu0 %v136
    %279 = vmatprep.subr.mxu0 0.0
    %280 = vmatpush1.msra.mxu0 %v133
    %281 = vmatprep.subr.mxu0 0.0
    %282 = vmatpush1.msra.mxu0 %v130
    %283 = vmatprep.subr.mxu0 0.0
    %284 = vmatpush1.msra.mxu0 %v127
    %285 = vmatprep.subr.mxu0 0.0
    %286 = vmatpush1.msra.mxu0 %v124
    %287 = vmatprep.subr.mxu0 0.0
    %288 = vmatpush1.msra.mxu0 %v121
    %289 = vmatprep.subr.mxu0 0.0
    %290 = vmatpush1.msra.mxu0 %v118
    %291 = vmatprep.subr.mxu0 0.0
    %292 = vmatpush1.msra.mxu0 %v115
    %293 = vmatprep.subr.mxu0 0.0
    %294 = vmatpush1.msra.mxu0 %v112
    %295 = vmatprep.subr.mxu0 0.0
    %296 = vmatpush1.msra.mxu0 %v109
    %297 = vmatprep.subr.mxu0 0.0
    %298 = vmatpush1.msra.mxu0 %v106
    %299 = vmatprep.subr.mxu0 0.0
    %300 = vmatpush1.msra.mxu0 %v103
    %301 = vmatprep.subr.mxu0 0.0
    %302 = vmatpush1.msra.mxu0 %v100
    %303 = vmatprep.subr.mxu0 0.0
    %304 = vmatpush1.msra.mxu0 %v97
    %305 = vmatprep.subr.mxu0 0.0
    %306 = vmatpush2.msra.mxu0 0.0
    %307 = vmatprep.subr.mxu0 0.0
    %308 = vmatpush2.msra.mxu0 0.0
    %309 = vmatprep.subr.mxu0 0.0
    %310 = vmatpush2.msra.mxu0 0.0
    %311 = vmatprep.subr.mxu0 0.0
    %312 = vmatpush2.msra.mxu0 0.0
    %313 = vmatprep.subr.mxu0 0.0
    %314 = vmatpush2.msra.mxu0 0.0
    %315 = vmatprep.subr.mxu0 0.0
    %316 = vmatpush2.msra.mxu0 0.0
    %317 = vmatprep.subr.mxu0 0.0
    %318 = vmatpush2.msra.mxu0 0.0
    %319 = vmatprep.subr.mxu0 0.0
    %320 = vmatpush2.msra.mxu0 0.0
    %321 = vmatprep.subr.mxu0 0.0
    %322 = vmatpush2.msra.mxu0 0.0
    %323 = vmatprep.subr.mxu0 0.0
    %324 = vmatpush2.msra.mxu0 0.0
    %325 = vmatprep.subr.mxu0 0.0
    %326 = vmatpush2.msra.mxu0 0.0
    %327 = vmatprep.subr.mxu0 0.0
    %328 = vmatpush2.msra.mxu0 0.0
    %329 = vmatprep.subr.mxu0 0.0
    %330 = vmatpush2.msra.mxu0 0.0
    %331 = vmatprep.subr.mxu0 0.0
    %332 = vmatpush2.msra.mxu0 0.0
    %333 = vmatprep.subr.mxu0 0.0
    %334 = vmatpush2.msra.mxu0 0.0
    %335 = vmatprep.subr.mxu0 0.0
    %336 = vmatpush2.msra.mxu0 0.0
    %337 = vmatprep.mubr.f32.mxu0 0.0
    %338 = vmatmul.mubr.f32.gmra.mxu0 %v87
    %v339 = vpop.f32.mrf.mxu0
    %v340 = vadd.f32 %v156, %v339
    %v341 = vpop.f32.mrf.mxu0
    %342 = vmatprep.mubr.f32.mxu0 0.0
    %343 = vmatmul.mubr.f32.gmra.mxu0 %v88
    %v344 = vpop.f32.mrf.mxu0
    %v345 = vadd.f32 %v156, %v344
    %v346 = vpop.f32.mrf.mxu0
    %347 = vmatprep.mubr.f32.mxu0 0.0
    %348 = vmatmul.mubr.f32.gmra.mxu0 %v89
    %v349 = vpop.f32.mrf.mxu0
    %v350 = vadd.f32 %v156, %v349
    %v351 = vpop.f32.mrf.mxu0
    %352 = vmatprep.mubr.f32.mxu0 0.0
    %353 = vmatmul.mubr.f32.gmra.mxu0 %v90
    %v354 = vpop.f32.mrf.mxu0
    %v355 = vadd.f32 %v156, %v354
    %v356 = vpop.f32.mrf.mxu0
    %357 = vmatprep.mubr.f32.mxu0 0.0
    %358 = vmatmul.mubr.f32.gmra.mxu0 %v91
    %v359 = vpop.f32.mrf.mxu0
    %v360 = vadd.f32 %v156, %v359
    %v361 = vpop.f32.mrf.mxu0
    %362 = vmatprep.mubr.f32.mxu0 0.0
    %363 = vmatmul.mubr.f32.gmra.mxu0 %v92
    %v364 = vpop.f32.mrf.mxu0
    %v365 = vadd.f32 %v156, %v364
    %v366 = vpop.f32.mrf.mxu0
    %367 = vmatprep.mubr.f32.mxu0 0.0
    %368 = vmatmul.mubr.f32.gmra.mxu0 %v93
    %v369 = vpop.f32.mrf.mxu0
    %v370 = vadd.f32 %v156, %v369
    %v371 = vpop.f32.mrf.mxu0
    %372 = vmatprep.mubr.f32.mxu0 0.0
    %373 = vmatmul.mubr.f32.gmra.mxu0 %v94
    %v374 = vpop.f32.mrf.mxu0
    %v375 = vadd.f32 %v156, %v374
    %v376 = vpop.f32.mrf.mxu0
    %377 = vdwg.mxu0
    %v378 = vld [vmem:[#allocation8] sm:$0xff]
    %v379 = vld [vmem:[#allocation8 + $0x8] sm:$0xff]
    %v380 = vld [vmem:[#allocation8 + $0x10] sm:$0xff]
    %v381 = vld [vmem:[#allocation8 + $0x18] sm:$0xff]
    %v382 = vld [vmem:[#allocation8 + $0x20] sm:$0xff]
    %v383 = vld [vmem:[#allocation8 + $0x28] sm:$0xff]
    %v384 = vld [vmem:[#allocation8 + $0x30] sm:$0xff]
    %v385 = vld [vmem:[#allocation8 + $0x38] sm:$0xff]
    %v386 = vld [vmem:[#allocation8 + $0x40] sm:$0xff]
    %v387 = vld [vmem:[#allocation8 + $0x48] sm:$0xff]
    %v388 = vld [vmem:[#allocation8 + $0x50] sm:$0xff]
    %v389 = vld [vmem:[#allocation8 + $0x58] sm:$0xff]
    %v390 = vld [vmem:[#allocation8 + $0x60] sm:$0xff]
    %v391 = vld [vmem:[#allocation8 + $0x68] sm:$0xff]
    %v392 = vld [vmem:[#allocation8 + $0x70] sm:$0xff]
    %v393 = vld [vmem:[#allocation8 + $0x78] sm:$0xff]
    %v394 = vld [vmem:[#allocation8 + $0x80] sm:$0xff]
    %v395 = vld [vmem:[#allocation8 + $0x88] sm:$0xff]
    %v396 = vld [vmem:[#allocation8 + $0x90] sm:$0xff]
    %v397 = vld [vmem:[#allocation8 + $0x98] sm:$0xff]
    %v398 = vld [vmem:[#allocation8 + $0xa0] sm:$0xff]
    %v399 = vld [vmem:[#allocation8 + $0xa8] sm:$0xff]
    %v400 = vld [vmem:[#allocation8 + $0xb0] sm:$0xff]
    %v401 = vld [vmem:[#allocation8 + $0xb8] sm:$0xff]
    %v402 = vld [vmem:[#allocation8 + $0xc0] sm:$0xff]
    %v403 = vld [vmem:[#allocation8 + $0xc8] sm:$0xff]
    %v404 = vld [vmem:[#allocation8 + $0xd0] sm:$0xff]
    %v405 = vld [vmem:[#allocation8 + $0xd8] sm:$0xff]
    %v406 = vld [vmem:[#allocation8 + $0xe0] sm:$0xff]
    %v407 = vld [vmem:[#allocation8 + $0xe8] sm:$0xff]
    %v408 = vld [vmem:[#allocation8 + $0xf0] sm:$0xff]
    %v409 = vld [vmem:[#allocation8 + $0xf8] sm:$0xff]
    %v410 = vld [vmem:[#allocation8 + $0x100] sm:$0xff]
    %v411 = vld [vmem:[#allocation8 + $0x108] sm:$0xff]
    %v412 = vld [vmem:[#allocation8 + $0x110] sm:$0xff]
    %v413 = vld [vmem:[#allocation8 + $0x118] sm:$0xff]
    %v414 = vld [vmem:[#allocation8 + $0x120] sm:$0xff]
    %v415 = vld [vmem:[#allocation8 + $0x128] sm:$0xff]
    %v416 = vld [vmem:[#allocation8 + $0x130] sm:$0xff]
    %v417 = vld [vmem:[#allocation8 + $0x138] sm:$0xff]
    %v418 = vld [vmem:[#allocation8 + $0x140] sm:$0xff]
    %v419 = vld [vmem:[#allocation8 + $0x148] sm:$0xff]
    %v420 = vld [vmem:[#allocation8 + $0x150] sm:$0xff]
    %v421 = vld [vmem:[#allocation8 + $0x158] sm:$0xff]
    %v422 = vld [vmem:[#allocation8 + $0x160] sm:$0xff]
    %v423 = vld [vmem:[#allocation8 + $0x168] sm:$0xff]
    %v424 = vld [vmem:[#allocation8 + $0x170] sm:$0xff]
    %v425 = vld [vmem:[#allocation8 + $0x178] sm:$0xff]
    %v426 = vld [vmem:[#allocation2] sm:$0xff]
    %v427 = vld [vmem:[%s4] sm:$0x7]
    %v429 = vlaneseq
    %v430 = vshrl.u32 %v429, 7
    %v431 = vsub.s32 0, %v430
    %v432 = vrot.slane %v427, %v431
    %v433 = vlaneseq
    %v434 = vshrl.u32 %v433, 7
    %v435 = vsub.s32 1, %v434
    %v436 = vrot.slane %v427, %v435
    %v437 = vlaneseq
    %v438 = vshrl.u32 %v437, 7
    %v439 = vsub.s32 2, %v438
    %v440 = vrot.slane %v427, %v439
    %444 = vmatprep.subr.mxu0 %v424
    %445 = vmatpush1.msra.mxu0 %v423
    %446 = vmatprep.subr.mxu0 %v421
    %447 = vmatpush1.msra.mxu0 %v420
    %448 = vmatprep.subr.mxu0 %v418
    %449 = vmatpush1.msra.mxu0 %v417
    %450 = vmatprep.subr.mxu0 %v415
    %451 = vmatpush1.msra.mxu0 %v414
    %452 = vmatprep.subr.mxu0 %v412
    %453 = vmatpush1.msra.mxu0 %v411
    %454 = vmatprep.subr.mxu0 %v409
    %455 = vmatpush1.msra.mxu0 %v408
    %456 = vmatprep.subr.mxu0 %v406
    %457 = vmatpush1.msra.mxu0 %v405
    %458 = vmatprep.subr.mxu0 %v403
    %459 = vmatpush1.msra.mxu0 %v402
    %460 = vmatprep.subr.mxu0 %v400
    %461 = vmatpush1.msra.mxu0 %v399
    %462 = vmatprep.subr.mxu0 %v397
    %463 = vmatpush1.msra.mxu0 %v396
    %464 = vmatprep.subr.mxu0 %v394
    %465 = vmatpush1.msra.mxu0 %v393
    %466 = vmatprep.subr.mxu0 %v391
    %467 = vmatpush1.msra.mxu0 %v390
    %468 = vmatprep.subr.mxu0 %v388
    %469 = vmatpush1.msra.mxu0 %v387
    %470 = vmatprep.subr.mxu0 %v385
    %471 = vmatpush1.msra.mxu0 %v384
    %472 = vmatprep.subr.mxu0 %v382
    %473 = vmatpush1.msra.mxu0 %v381
    %474 = vmatprep.subr.mxu0 %v379
    %475 = vmatpush1.msra.mxu0 %v378
    %476 = vmatprep.subr.mxu0 0.0
    %477 = vmatpush2.msra.mxu0 0.0
    %478 = vmatprep.subr.mxu0 0.0
    %479 = vmatpush2.msra.mxu0 0.0
    %480 = vmatprep.subr.mxu0 0.0
    %481 = vmatpush2.msra.mxu0 0.0
    %482 = vmatprep.subr.mxu0 0.0
    %483 = vmatpush2.msra.mxu0 0.0
    %484 = vmatprep.subr.mxu0 0.0
    %485 = vmatpush2.msra.mxu0 0.0
    %486 = vmatprep.subr.mxu0 0.0
    %487 = vmatpush2.msra.mxu0 0.0
    %488 = vmatprep.subr.mxu0 0.0
    %489 = vmatpush2.msra.mxu0 0.0
    %490 = vmatprep.subr.mxu0 0.0
    %491 = vmatpush2.msra.mxu0 0.0
    %492 = vmatprep.subr.mxu0 0.0
    %493 = vmatpush2.msra.mxu0 0.0
    %494 = vmatprep.subr.mxu0 0.0
    %495 = vmatpush2.msra.mxu0 0.0
    %496 = vmatprep.subr.mxu0 0.0
    %497 = vmatpush2.msra.mxu0 0.0
    %498 = vmatprep.subr.mxu0 0.0
    %499 = vmatpush2.msra.mxu0 0.0
    %500 = vmatprep.subr.mxu0 0.0
    %501 = vmatpush2.msra.mxu0 0.0
    %502 = vmatprep.subr.mxu0 0.0
    %503 = vmatpush2.msra.mxu0 0.0
    %504 = vmatprep.subr.mxu0 0.0
    %505 = vmatpush2.msra.mxu0 0.0
    %506 = vmatprep.subr.mxu0 0.0
    %507 = vmatpush2.msra.mxu0 0.0
    %508 = vmatprep.mubr.f32.mxu0 0.0
    %509 = vmatmul.mubr.f32.gmra.mxu0 %v426
    %v510 = vpop.f32.mrf.mxu0
    %v511 = vadd.f32 %v432, %v510
    %v512 = vpop.f32.mrf.mxu0
    %v513 = vadd.f32 %v436, %v512
    %514 = vdwg.mxu0
    %515 = vmatprep.subr.mxu0 0.0
    %516 = vmatpush1.msra.mxu0 %v425
    %517 = vmatprep.subr.mxu0 0.0
    %518 = vmatpush1.msra.mxu0 %v422
    %519 = vmatprep.subr.mxu0 0.0
    %520 = vmatpush1.msra.mxu0 %v419
    %521 = vmatprep.subr.mxu0 0.0
    %522 = vmatpush1.msra.mxu0 %v416
    %523 = vmatprep.subr.mxu0 0.0
    %524 = vmatpush1.msra.mxu0 %v413
    %525 = vmatprep.subr.mxu0 0.0
    %526 = vmatpush1.msra.mxu0 %v410
    %527 = vmatprep.subr.mxu0 0.0
    %528 = vmatpush1.msra.mxu0 %v407
    %529 = vmatprep.subr.mxu0 0.0
    %530 = vmatpush1.msra.mxu0 %v404
    %531 = vmatprep.subr.mxu0 0.0
    %532 = vmatpush1.msra.mxu0 %v401
    %533 = vmatprep.subr.mxu0 0.0
    %534 = vmatpush1.msra.mxu0 %v398
    %535 = vmatprep.subr.mxu0 0.0
    %536 = vmatpush1.msra.mxu0 %v395
    %537 = vmatprep.subr.mxu0 0.0
    %538 = vmatpush1.msra.mxu0 %v392
    %539 = vmatprep.subr.mxu0 0.0
    %540 = vmatpush1.msra.mxu0 %v389
    %541 = vmatprep.subr.mxu0 0.0
    %542 = vmatpush1.msra.mxu0 %v386
    %543 = vmatprep.subr.mxu0 0.0
    %544 = vmatpush1.msra.mxu0 %v383
    %545 = vmatprep.subr.mxu0 0.0
    %546 = vmatpush1.msra.mxu0 %v380
    %547 = vmatprep.subr.mxu0 0.0
    %548 = vmatpush2.msra.mxu0 0.0
    %549 = vmatprep.subr.mxu0 0.0
    %550 = vmatpush2.msra.mxu0 0.0
    %551 = vmatprep.subr.mxu0 0.0
    %552 = vmatpush2.msra.mxu0 0.0
    %553 = vmatprep.subr.mxu0 0.0
    %554 = vmatpush2.msra.mxu0 0.0
    %555 = vmatprep.subr.mxu0 0.0
    %556 = vmatpush2.msra.mxu0 0.0
    %557 = vmatprep.subr.mxu0 0.0
    %558 = vmatpush2.msra.mxu0 0.0
    %559 = vmatprep.subr.mxu0 0.0
    %560 = vmatpush2.msra.mxu0 0.0
    %561 = vmatprep.subr.mxu0 0.0
    %562 = vmatpush2.msra.mxu0 0.0
    %563 = vmatprep.subr.mxu0 0.0
    %564 = vmatpush2.msra.mxu0 0.0
    %565 = vmatprep.subr.mxu0 0.0
    %566 = vmatpush2.msra.mxu0 0.0
    %567 = vmatprep.subr.mxu0 0.0
    %568 = vmatpush2.msra.mxu0 0.0
    %569 = vmatprep.subr.mxu0 0.0
    %570 = vmatpush2.msra.mxu0 0.0
    %571 = vmatprep.subr.mxu0 0.0
    %572 = vmatpush2.msra.mxu0 0.0
    %573 = vmatprep.subr.mxu0 0.0
    %574 = vmatpush2.msra.mxu0 0.0
    %575 = vmatprep.subr.mxu0 0.0
    %576 = vmatpush2.msra.mxu0 0.0
    %577 = vmatprep.subr.mxu0 0.0
    %578 = vmatpush2.msra.mxu0 0.0
    %579 = vmatprep.mubr.f32.mxu0 0.0
    %580 = vmatmul.mubr.f32.gmra.mxu0 %v426
    %v581 = vpop.f32.mrf.mxu0
    %v582 = vadd.f32 %v440, %v581
    %v583 = vpop.f32.mrf.mxu0
    %584 = vdwg.mxu0
    %v585 = vadd.f32 %v227, %v511
    %v586 = vxor.u32 %v585, 2147483648
    %v587 = vmul.f32 %v586, 1.442695
    %v588 = vpow.pop %v587
    %v589 = vadd.f32 %v588, 1.0
    %v590 = vrcp.pop %v589
    %v591 = vmul.f32 1.0, %v590
    %v592 = vadd.f32 %v229, %v513
    %v593 = vxor.u32 %v592, 2147483648
    %v594 = vmul.f32 %v593, 1.442695
    %v595 = vpow.pop %v594
    %v596 = vadd.f32 %v595, 1.0
    %v597 = vrcp.pop %v596
    %v598 = vmul.f32 1.0, %v597
    %v599 = vmul.f32 %v591, %v582
    %v600 = vadd.f32 %v340, %v599
    %v601 = vtanh.pop %v600
    %v602 = vsub.f32 1.0, %v598
    %v603 = vmul.f32 %v602, %v601
    %v604 = vmul.f32 %v598, %v426
    %v605 = vadd.f32 %v603, %v604
    %606 = vmatprep.subr.mxu0 %v424
    %607 = vmatpush1.msra.mxu0 %v423
    %608 = vmatprep.subr.mxu0 %v421
    %609 = vmatpush1.msra.mxu0 %v420
    %610 = vmatprep.subr.mxu0 %v418
    %611 = vmatpush1.msra.mxu0 %v417
    %612 = vmatprep.subr.mxu0 %v415
    %613 = vmatpush1.msra.mxu0 %v414
    %614 = vmatprep.subr.mxu0 %v412
    %615 = vmatpush1.msra.mxu0 %v411
    %616 = vmatprep.subr.mxu0 %v409
    %617 = vmatpush1.msra.mxu0 %v408
    %618 = vmatprep.subr.mxu0 %v406
    %619 = vmatpush1.msra.mxu0 %v405
    %620 = vmatprep.subr.mxu0 %v403
    %621 = vmatpush1.msra.mxu0 %v402
    %622 = vmatprep.subr.mxu0 %v400
    %623 = vmatpush1.msra.mxu0 %v399
    %624 = vmatprep.subr.mxu0 %v397
    %625 = vmatpush1.msra.mxu0 %v396
    %626 = vmatprep.subr.mxu0 %v394
    %627 = vmatpush1.msra.mxu0 %v393
    %628 = vmatprep.subr.mxu0 %v391
    %629 = vmatpush1.msra.mxu0 %v390
    %630 = vmatprep.subr.mxu0 %v388
    %631 = vmatpush1.msra.mxu0 %v387
    %632 = vmatprep.subr.mxu0 %v385
    %633 = vmatpush1.msra.mxu0 %v384
    %634 = vmatprep.subr.mxu0 %v382
    %635 = vmatpush1.msra.mxu0 %v381
    %636 = vmatprep.subr.mxu0 %v379
    %637 = vmatpush1.msra.mxu0 %v378
    %638 = vmatprep.subr.mxu0 0.0
    %639 = vmatpush2.msra.mxu0 0.0
    %640 = vmatprep.subr.mxu0 0.0
    %641 = vmatpush2.msra.mxu0 0.0
    %642 = vmatprep.subr.mxu0 0.0
    %643 = vmatpush2.msra.mxu0 0.0
    %644 = vmatprep.subr.mxu0 0.0
    %645 = vmatpush2.msra.mxu0 0.0
    %646 = vmatprep.subr.mxu0 0.0
    %647 = vmatpush2.msra.mxu0 0.0
    %648 = vmatprep.subr.mxu0 0.0
    %649 = vmatpush2.msra.mxu0 0.0
    %650 = vmatprep.subr.mxu0 0.0
    %651 = vmatpush2.msra.mxu0 0.0
    %652 = vmatprep.subr.mxu0 0.0
    %653 = vmatpush2.msra.mxu0 0.0
    %654 = vmatprep.subr.mxu0 0.0
    %655 = vmatpush2.msra.mxu0 0.0
    %656 = vmatprep.subr.mxu0 0.0
    %657 = vmatpush2.msra.mxu0 0.0
    %658 = vmatprep.subr.mxu0 0.0
    %659 = vmatpush2.msra.mxu0 0.0
    %660 = vmatprep.subr.mxu0 0.0
    %661 = vmatpush2.msra.mxu0 0.0
    %662 = vmatprep.subr.mxu0 0.0
    %663 = vmatpush2.msra.mxu0 0.0
    %664 = vmatprep.subr.mxu0 0.0
    %665 = vmatpush2.msra.mxu0 0.0
    %666 = vmatprep.subr.mxu0 0.0
    %667 = vmatpush2.msra.mxu0 0.0
    %668 = vmatprep.subr.mxu0 0.0
    %669 = vmatpush2.msra.mxu0 0.0
    %670 = vmatprep.mubr.f32.mxu0 0.0
    %671 = vmatmul.mubr.f32.gmra.mxu0 %v605
    %v672 = vpop.f32.mrf.mxu0
    %v673 = vadd.f32 %v432, %v672
    %v674 = vpop.f32.mrf.mxu0
    %v675 = vadd.f32 %v436, %v674
    %676 = vdwg.mxu0
    %677 = vmatprep.subr.mxu0 0.0
    %678 = vmatpush1.msra.mxu0 %v425
    %679 = vmatprep.subr.mxu0 0.0
    %680 = vmatpush1.msra.mxu0 %v422
    %681 = vmatprep.subr.mxu0 0.0
    %682 = vmatpush1.msra.mxu0 %v419
    %683 = vmatprep.subr.mxu0 0.0
    %684 = vmatpush1.msra.mxu0 %v416
    %685 = vmatprep.subr.mxu0 0.0
    %686 = vmatpush1.msra.mxu0 %v413
    %687 = vmatprep.subr.mxu0 0.0
    %688 = vmatpush1.msra.mxu0 %v410
    %689 = vmatprep.subr.mxu0 0.0
    %690 = vmatpush1.msra.mxu0 %v407
    %691 = vmatprep.subr.mxu0 0.0
    %692 = vmatpush1.msra.mxu0 %v404
    %693 = vmatprep.subr.mxu0 0.0
    %694 = vmatpush1.msra.mxu0 %v401
    %695 = vmatprep.subr.mxu0 0.0
    %696 = vmatpush1.msra.mxu0 %v398
    %697 = vmatprep.subr.mxu0 0.0
    %698 = vmatpush1.msra.mxu0 %v395
    %699 = vmatprep.subr.mxu0 0.0
    %700 = vmatpush1.msra.mxu0 %v392
    %701 = vmatprep.subr.mxu0 0.0
    %702 = vmatpush1.msra.mxu0 %v389
    %703 = vmatprep.subr.mxu0 0.0
    %704 = vmatpush1.msra.mxu0 %v386
    %705 = vmatprep.subr.mxu0 0.0
    %706 = vmatpush1.msra.mxu0 %v383
    %707 = vmatprep.subr.mxu0 0.0
    %708 = vmatpush1.msra.mxu0 %v380
    %709 = vmatprep.subr.mxu0 0.0
    %710 = vmatpush2.msra.mxu0 0.0
    %711 = vmatprep.subr.mxu0 0.0
    %712 = vmatpush2.msra.mxu0 0.0
    %713 = vmatprep.subr.mxu0 0.0
    %714 = vmatpush2.msra.mxu0 0.0
    %715 = vmatprep.subr.mxu0 0.0
    %716 = vmatpush2.msra.mxu0 0.0
    %717 = vmatprep.subr.mxu0 0.0
    %718 = vmatpush2.msra.mxu0 0.0
    %719 = vmatprep.subr.mxu0 0.0
    %720 = vmatpush2.msra.mxu0 0.0
    %721 = vmatprep.subr.mxu0 0.0
    %722 = vmatpush2.msra.mxu0 0.0
    %723 = vmatprep.subr.mxu0 0.0
    %724 = vmatpush2.msra.mxu0 0.0
    %725 = vmatprep.subr.mxu0 0.0
    %726 = vmatpush2.msra.mxu0 0.0
    %727 = vmatprep.subr.mxu0 0.0
    %728 = vmatpush2.msra.mxu0 0.0
    %729 = vmatprep.subr.mxu0 0.0
    %730 = vmatpush2.msra.mxu0 0.0
    %731 = vmatprep.subr.mxu0 0.0
    %732 = vmatpush2.msra.mxu0 0.0
    %733 = vmatprep.subr.mxu0 0.0
    %734 = vmatpush2.msra.mxu0 0.0
    %735 = vmatprep.subr.mxu0 0.0
    %736 = vmatpush2.msra.mxu0 0.0
    %737 = vmatprep.subr.mxu0 0.0
    %738 = vmatpush2.msra.mxu0 0.0
    %739 = vmatprep.subr.mxu0 0.0
    %740 = vmatpush2.msra.mxu0 0.0
    %741 = vmatprep.mubr.f32.mxu0 0.0
    %742 = vmatmul.mubr.f32.gmra.mxu0 %v605
    %v743 = vpop.f32.mrf.mxu0
    %v744 = vadd.f32 %v440, %v743
    %v745 = vpop.f32.mrf.mxu0
    %746 = vdwg.mxu0
    %v747 = vadd.f32 %v233, %v673
    %v748 = vxor.u32 %v747, 2147483648
    %v749 = vmul.f32 %v748, 1.442695
    %v750 = vpow.pop %v749
    %v751 = vadd.f32 %v750, 1.0
    %v752 = vrcp.pop %v751
    %v753 = vmul.f32 1.0, %v752
    %v754 = vadd.f32 %v235, %v675
    %v755 = vxor.u32 %v754, 2147483648
    %v756 = vmul.f32 %v755, 1.442695
    %v757 = vpow.pop %v756
    %v758 = vadd.f32 %v757, 1.0
    %v759 = vrcp.pop %v758
    %v760 = vmul.f32 1.0, %v759
    %v761 = vmul.f32 %v753, %v744
    %v762 = vadd.f32 %v345, %v761
    %v763 = vtanh.pop %v762
    %v764 = vsub.f32 1.0, %v760
    %v765 = vmul.f32 %v764, %v763
    %v766 = vmul.f32 %v760, %v605
    %v767 = vadd.f32 %v765, %v766
    %768 = vmatprep.subr.mxu0 %v424
    %769 = vmatpush1.msra.mxu0 %v423
    %770 = vmatprep.subr.mxu0 %v421
    %771 = vmatpush1.msra.mxu0 %v420
    %772 = vmatprep.subr.mxu0 %v418
    %773 = vmatpush1.msra.mxu0 %v417
    %774 = vmatprep.subr.mxu0 %v415
    %775 = vmatpush1.msra.mxu0 %v414
    %776 = vmatprep.subr.mxu0 %v412
    %777 = vmatpush1.msra.mxu0 %v411
    %778 = vmatprep.subr.mxu0 %v409
    %779 = vmatpush1.msra.mxu0 %v408
    %780 = vmatprep.subr.mxu0 %v406
    %781 = vmatpush1.msra.mxu0 %v405
    %782 = vmatprep.subr.mxu0 %v403
    %783 = vmatpush1.msra.mxu0 %v402
    %784 = vmatprep.subr.mxu0 %v400
    %785 = vmatpush1.msra.mxu0 %v399
    %786 = vmatprep.subr.mxu0 %v397
    %787 = vmatpush1.msra.mxu0 %v396
    %788 = vmatprep.subr.mxu0 %v394
    %789 = vmatpush1.msra.mxu0 %v393
    %790 = vmatprep.subr.mxu0 %v391
    %791 = vmatpush1.msra.mxu0 %v390
    %792 = vmatprep.subr.mxu0 %v388
    %793 = vmatpush1.msra.mxu0 %v387
    %794 = vmatprep.subr.mxu0 %v385
    %795 = vmatpush1.msra.mxu0 %v384
    %796 = vmatprep.subr.mxu0 %v382
    %797 = vmatpush1.msra.mxu0 %v381
    %798 = vmatprep.subr.mxu0 %v379
    %799 = vmatpush1.msra.mxu0 %v378
    %800 = vmatprep.subr.mxu0 0.0
    %801 = vmatpush2.msra.mxu0 0.0
    %802 = vmatprep.subr.mxu0 0.0
    %803 = vmatpush2.msra.mxu0 0.0
    %804 = vmatprep.subr.mxu0 0.0
    %805 = vmatpush2.msra.mxu0 0.0
    %806 = vmatprep.subr.mxu0 0.0
    %807 = vmatpush2.msra.mxu0 0.0
    %808 = vmatprep.subr.mxu0 0.0
    %809 = vmatpush2.msra.mxu0 0.0
    %810 = vmatprep.subr.mxu0 0.0
    %811 = vmatpush2.msra.mxu0 0.0
    %812 = vmatprep.subr.mxu0 0.0
    %813 = vmatpush2.msra.mxu0 0.0
    %814 = vmatprep.subr.mxu0 0.0
    %815 = vmatpush2.msra.mxu0 0.0
    %816 = vmatprep.subr.mxu0 0.0
    %817 = vmatpush2.msra.mxu0 0.0
    %818 = vmatprep.subr.mxu0 0.0
    %819 = vmatpush2.msra.mxu0 0.0
    %820 = vmatprep.subr.mxu0 0.0
    %821 = vmatpush2.msra.mxu0 0.0
    %822 = vmatprep.subr.mxu0 0.0
    %823 = vmatpush2.msra.mxu0 0.0
    %824 = vmatprep.subr.mxu0 0.0
    %825 = vmatpush2.msra.mxu0 0.0
    %826 = vmatprep.subr.mxu0 0.0
    %827 = vmatpush2.msra.mxu0 0.0
    %828 = vmatprep.subr.mxu0 0.0
    %829 = vmatpush2.msra.mxu0 0.0
    %830 = vmatprep.subr.mxu0 0.0
    %831 = vmatpush2.msra.mxu0 0.0
    %832 = vmatprep.mubr.f32.mxu0 0.0
    %833 = vmatmul.mubr.f32.gmra.mxu0 %v767
    %v834 = vpop.f32.mrf.mxu0
    %v835 = vadd.f32 %v432, %v834
    %v836 = vpop.f32.mrf.mxu0
    %v837 = vadd.f32 %v436, %v836
    %838 = vdwg.mxu0
    %839 = vmatprep.subr.mxu0 0.0
    %840 = vmatpush1.msra.mxu0 %v425
    %841 = vmatprep.subr.mxu0 0.0
    %842 = vmatpush1.msra.mxu0 %v422
    %843 = vmatprep.subr.mxu0 0.0
    %844 = vmatpush1.msra.mxu0 %v419
    %845 = vmatprep.subr.mxu0 0.0
    %846 = vmatpush1.msra.mxu0 %v416
    %847 = vmatprep.subr.mxu0 0.0
    %848 = vmatpush1.msra.mxu0 %v413
    %849 = vmatprep.subr.mxu0 0.0
    %850 = vmatpush1.msra.mxu0 %v410
    %851 = vmatprep.subr.mxu0 0.0
    %852 = vmatpush1.msra.mxu0 %v407
    %853 = vmatprep.subr.mxu0 0.0
    %854 = vmatpush1.msra.mxu0 %v404
    %855 = vmatprep.subr.mxu0 0.0
    %856 = vmatpush1.msra.mxu0 %v401
    %857 = vmatprep.subr.mxu0 0.0
    %858 = vmatpush1.msra.mxu0 %v398
    %859 = vmatprep.subr.mxu0 0.0
    %860 = vmatpush1.msra.mxu0 %v395
    %861 = vmatprep.subr.mxu0 0.0
    %862 = vmatpush1.msra.mxu0 %v392
    %863 = vmatprep.subr.mxu0 0.0
    %864 = vmatpush1.msra.mxu0 %v389
    %865 = vmatprep.subr.mxu0 0.0
    %866 = vmatpush1.msra.mxu0 %v386
    %867 = vmatprep.subr.mxu0 0.0
    %868 = vmatpush1.msra.mxu0 %v383
    %869 = vmatprep.subr.mxu0 0.0
    %870 = vmatpush1.msra.mxu0 %v380
    %871 = vmatprep.subr.mxu0 0.0
    %872 = vmatpush2.msra.mxu0 0.0
    %873 = vmatprep.subr.mxu0 0.0
    %874 = vmatpush2.msra.mxu0 0.0
    %875 = vmatprep.subr.mxu0 0.0
    %876 = vmatpush2.msra.mxu0 0.0
    %877 = vmatprep.subr.mxu0 0.0
    %878 = vmatpush2.msra.mxu0 0.0
    %879 = vmatprep.subr.mxu0 0.0
    %880 = vmatpush2.msra.mxu0 0.0
    %881 = vmatprep.subr.mxu0 0.0
    %882 = vmatpush2.msra.mxu0 0.0
    %883 = vmatprep.subr.mxu0 0.0
    %884 = vmatpush2.msra.mxu0 0.0
    %885 = vmatprep.subr.mxu0 0.0
    %886 = vmatpush2.msra.mxu0 0.0
    %887 = vmatprep.subr.mxu0 0.0
    %888 = vmatpush2.msra.mxu0 0.0
    %889 = vmatprep.subr.mxu0 0.0
    %890 = vmatpush2.msra.mxu0 0.0
    %891 = vmatprep.subr.mxu0 0.0
    %892 = vmatpush2.msra.mxu0 0.0
    %893 = vmatprep.subr.mxu0 0.0
    %894 = vmatpush2.msra.mxu0 0.0
    %895 = vmatprep.subr.mxu0 0.0
    %896 = vmatpush2.msra.mxu0 0.0
    %897 = vmatprep.subr.mxu0 0.0
    %898 = vmatpush2.msra.mxu0 0.0
    %899 = vmatprep.subr.mxu0 0.0
    %900 = vmatpush2.msra.mxu0 0.0
    %901 = vmatprep.subr.mxu0 0.0
    %902 = vmatpush2.msra.mxu0 0.0
    %903 = vmatprep.mubr.f32.mxu0 0.0
    %904 = vmatmul.mubr.f32.gmra.mxu0 %v767
    %v905 = vpop.f32.mrf.mxu0
    %v906 = vadd.f32 %v440, %v905
    %v907 = vpop.f32.mrf.mxu0
    %908 = vdwg.mxu0
    %v909 = vadd.f32 %v239, %v835
    %v910 = vxor.u32 %v909, 2147483648
    %v911 = vmul.f32 %v910, 1.442695
    %v912 = vpow.pop %v911
    %v913 = vadd.f32 %v912, 1.0
    %v914 = vrcp.pop %v913
    %v915 = vmul.f32 1.0, %v914
    %v916 = vadd.f32 %v241, %v837
    %v917 = vxor.u32 %v916, 2147483648
    %v918 = vmul.f32 %v917, 1.442695
    %v919 = vpow.pop %v918
    %v920 = vadd.f32 %v919, 1.0
    %v921 = vrcp.pop %v920
    %v922 = vmul.f32 1.0, %v921
    %v923 = vmul.f32 %v915, %v906
    %v924 = vadd.f32 %v350, %v923
    %v925 = vtanh.pop %v924
    %v926 = vsub.f32 1.0, %v922
    %v927 = vmul.f32 %v926, %v925
    %v928 = vmul.f32 %v922, %v767
    %v929 = vadd.f32 %v927, %v928
    %930 = vmatprep.subr.mxu0 %v424
    %931 = vmatpush1.msra.mxu0 %v423
    %932 = vmatprep.subr.mxu0 %v421
    %933 = vmatpush1.msra.mxu0 %v420
    %934 = vmatprep.subr.mxu0 %v418
    %935 = vmatpush1.msra.mxu0 %v417
    %936 = vmatprep.subr.mxu0 %v415
    %937 = vmatpush1.msra.mxu0 %v414
    %938 = vmatprep.subr.mxu0 %v412
    %939 = vmatpush1.msra.mxu0 %v411
    %940 = vmatprep.subr.mxu0 %v409
    %941 = vmatpush1.msra.mxu0 %v408
    %942 = vmatprep.subr.mxu0 %v406
    %943 = vmatpush1.msra.mxu0 %v405
    %944 = vmatprep.subr.mxu0 %v403
    %945 = vmatpush1.msra.mxu0 %v402
    %946 = vmatprep.subr.mxu0 %v400
    %947 = vmatpush1.msra.mxu0 %v399
    %948 = vmatprep.subr.mxu0 %v397
    %949 = vmatpush1.msra.mxu0 %v396
    %950 = vmatprep.subr.mxu0 %v394
    %951 = vmatpush1.msra.mxu0 %v393
    %952 = vmatprep.subr.mxu0 %v391
    %953 = vmatpush1.msra.mxu0 %v390
    %954 = vmatprep.subr.mxu0 %v388
    %955 = vmatpush1.msra.mxu0 %v387
    %956 = vmatprep.subr.mxu0 %v385
    %957 = vmatpush1.msra.mxu0 %v384
    %958 = vmatprep.subr.mxu0 %v382
    %959 = vmatpush1.msra.mxu0 %v381
    %960 = vmatprep.subr.mxu0 %v379
    %961 = vmatpush1.msra.mxu0 %v378
    %962 = vmatprep.subr.mxu0 0.0
    %963 = vmatpush2.msra.mxu0 0.0
    %964 = vmatprep.subr.mxu0 0.0
    %965 = vmatpush2.msra.mxu0 0.0
    %966 = vmatprep.subr.mxu0 0.0
    %967 = vmatpush2.msra.mxu0 0.0
    %968 = vmatprep.subr.mxu0 0.0
    %969 = vmatpush2.msra.mxu0 0.0
    %970 = vmatprep.subr.mxu0 0.0
    %971 = vmatpush2.msra.mxu0 0.0
    %972 = vmatprep.subr.mxu0 0.0
    %973 = vmatpush2.msra.mxu0 0.0
    %974 = vmatprep.subr.mxu0 0.0
    %975 = vmatpush2.msra.mxu0 0.0
    %976 = vmatprep.subr.mxu0 0.0
    %977 = vmatpush2.msra.mxu0 0.0
    %978 = vmatprep.subr.mxu0 0.0
    %979 = vmatpush2.msra.mxu0 0.0
    %980 = vmatprep.subr.mxu0 0.0
    %981 = vmatpush2.msra.mxu0 0.0
    %982 = vmatprep.subr.mxu0 0.0
    %983 = vmatpush2.msra.mxu0 0.0
    %984 = vmatprep.subr.mxu0 0.0
    %985 = vmatpush2.msra.mxu0 0.0
    %986 = vmatprep.subr.mxu0 0.0
    %987 = vmatpush2.msra.mxu0 0.0
    %988 = vmatprep.subr.mxu0 0.0
    %989 = vmatpush2.msra.mxu0 0.0
    %990 = vmatprep.subr.mxu0 0.0
    %991 = vmatpush2.msra.mxu0 0.0
    %992 = vmatprep.subr.mxu0 0.0
    %993 = vmatpush2.msra.mxu0 0.0
    %994 = vmatprep.mubr.f32.mxu0 0.0
    %995 = vmatmul.mubr.f32.gmra.mxu0 %v929
    %v996 = vpop.f32.mrf.mxu0
    %v997 = vadd.f32 %v432, %v996
    %v998 = vpop.f32.mrf.mxu0
    %v999 = vadd.f32 %v436, %v998
    %1000 = vdwg.mxu0
    %1001 = vmatprep.subr.mxu0 0.0
    %1002 = vmatpush1.msra.mxu0 %v425
    %1003 = vmatprep.subr.mxu0 0.0
    %1004 = vmatpush1.msra.mxu0 %v422
    %1005 = vmatprep.subr.mxu0 0.0
    %1006 = vmatpush1.msra.mxu0 %v419
    %1007 = vmatprep.subr.mxu0 0.0
    %1008 = vmatpush1.msra.mxu0 %v416
    %1009 = vmatprep.subr.mxu0 0.0
    %1010 = vmatpush1.msra.mxu0 %v413
    %1011 = vmatprep.subr.mxu0 0.0
    %1012 = vmatpush1.msra.mxu0 %v410
    %1013 = vmatprep.subr.mxu0 0.0
    %1014 = vmatpush1.msra.mxu0 %v407
    %1015 = vmatprep.subr.mxu0 0.0
    %1016 = vmatpush1.msra.mxu0 %v404
    %1017 = vmatprep.subr.mxu0 0.0
    %1018 = vmatpush1.msra.mxu0 %v401
    %1019 = vmatprep.subr.mxu0 0.0
    %1020 = vmatpush1.msra.mxu0 %v398
    %1021 = vmatprep.subr.mxu0 0.0
    %1022 = vmatpush1.msra.mxu0 %v395
    %1023 = vmatprep.subr.mxu0 0.0
    %1024 = vmatpush1.msra.mxu0 %v392
    %1025 = vmatprep.subr.mxu0 0.0
    %1026 = vmatpush1.msra.mxu0 %v389
    %1027 = vmatprep.subr.mxu0 0.0
    %1028 = vmatpush1.msra.mxu0 %v386
    %1029 = vmatprep.subr.mxu0 0.0
    %1030 = vmatpush1.msra.mxu0 %v383
    %1031 = vmatprep.subr.mxu0 0.0
    %1032 = vmatpush1.msra.mxu0 %v380
    %1033 = vmatprep.subr.mxu0 0.0
    %1034 = vmatpush2.msra.mxu0 0.0
    %1035 = vmatprep.subr.mxu0 0.0
    %1036 = vmatpush2.msra.mxu0 0.0
    %1037 = vmatprep.subr.mxu0 0.0
    %1038 = vmatpush2.msra.mxu0 0.0
    %1039 = vmatprep.subr.mxu0 0.0
    %1040 = vmatpush2.msra.mxu0 0.0
    %1041 = vmatprep.subr.mxu0 0.0
    %1042 = vmatpush2.msra.mxu0 0.0
    %1043 = vmatprep.subr.mxu0 0.0
    %1044 = vmatpush2.msra.mxu0 0.0
    %1045 = vmatprep.subr.mxu0 0.0
    %1046 = vmatpush2.msra.mxu0 0.0
    %1047 = vmatprep.subr.mxu0 0.0
    %1048 = vmatpush2.msra.mxu0 0.0
    %1049 = vmatprep.subr.mxu0 0.0
    %1050 = vmatpush2.msra.mxu0 0.0
    %1051 = vmatprep.subr.mxu0 0.0
    %1052 = vmatpush2.msra.mxu0 0.0
    %1053 = vmatprep.subr.mxu0 0.0
    %1054 = vmatpush2.msra.mxu0 0.0
    %1055 = vmatprep.subr.mxu0 0.0
    %1056 = vmatpush2.msra.mxu0 0.0
    %1057 = vmatprep.subr.mxu0 0.0
    %1058 = vmatpush2.msra.mxu0 0.0
    %1059 = vmatprep.subr.mxu0 0.0
    %1060 = vmatpush2.msra.mxu0 0.0
    %1061 = vmatprep.subr.mxu0 0.0
    %1062 = vmatpush2.msra.mxu0 0.0
    %1063 = vmatprep.subr.mxu0 0.0
    %1064 = vmatpush2.msra.mxu0 0.0
    %1065 = vmatprep.mubr.f32.mxu0 0.0
    %1066 = vmatmul.mubr.f32.gmra.mxu0 %v929
    %v1067 = vpop.f32.mrf.mxu0
    %v1068 = vadd.f32 %v440, %v1067
    %v1069 = vpop.f32.mrf.mxu0
    %1070 = vdwg.mxu0
    %v1071 = vadd.f32 %v245, %v997
    %v1072 = vxor.u32 %v1071, 2147483648
    %v1073 = vmul.f32 %v1072, 1.442695
    %v1074 = vpow.pop %v1073
    %v1075 = vadd.f32 %v1074, 1.0
    %v1076 = vrcp.pop %v1075
    %v1077 = vmul.f32 1.0, %v1076
    %v1078 = vadd.f32 %v247, %v999
    %v1079 = vxor.u32 %v1078, 2147483648
    %v1080 = vmul.f32 %v1079, 1.442695
    %v1081 = vpow.pop %v1080
    %v1082 = vadd.f32 %v1081, 1.0
    %v1083 = vrcp.pop %v1082
    %v1084 = vmul.f32 1.0, %v1083
    %v1085 = vmul.f32 %v1077, %v1068
    %v1086 = vadd.f32 %v355, %v1085
    %v1087 = vtanh.pop %v1086
    %v1088 = vsub.f32 1.0, %v1084
    %v1089 = vmul.f32 %v1088, %v1087
    %v1090 = vmul.f32 %v1084, %v929
    %v1091 = vadd.f32 %v1089, %v1090
    %1092 = vmatprep.subr.mxu0 %v424
    %1093 = vmatpush1.msra.mxu0 %v423
    %1094 = vmatprep.subr.mxu0 %v421
    %1095 = vmatpush1.msra.mxu0 %v420
    %1096 = vmatprep.subr.mxu0 %v418
    %1097 = vmatpush1.msra.mxu0 %v417
    %1098 = vmatprep.subr.mxu0 %v415
    %1099 = vmatpush1.msra.mxu0 %v414
    %1100 = vmatprep.subr.mxu0 %v412
    %1101 = vmatpush1.msra.mxu0 %v411
    %1102 = vmatprep.subr.mxu0 %v409
    %1103 = vmatpush1.msra.mxu0 %v408
    %1104 = vmatprep.subr.mxu0 %v406
    %1105 = vmatpush1.msra.mxu0 %v405
    %1106 = vmatprep.subr.mxu0 %v403
    %1107 = vmatpush1.msra.mxu0 %v402
    %1108 = vmatprep.subr.mxu0 %v400
    %1109 = vmatpush1.msra.mxu0 %v399
    %1110 = vmatprep.subr.mxu0 %v397
    %1111 = vmatpush1.msra.mxu0 %v396
    %1112 = vmatprep.subr.mxu0 %v394
    %1113 = vmatpush1.msra.mxu0 %v393
    %1114 = vmatprep.subr.mxu0 %v391
    %1115 = vmatpush1.msra.mxu0 %v390
    %1116 = vmatprep.subr.mxu0 %v388
    %1117 = vmatpush1.msra.mxu0 %v387
    %1118 = vmatprep.subr.mxu0 %v385
    %1119 = vmatpush1.msra.mxu0 %v384
    %1120 = vmatprep.subr.mxu0 %v382
    %1121 = vmatpush1.msra.mxu0 %v381
    %1122 = vmatprep.subr.mxu0 %v379
    %1123 = vmatpush1.msra.mxu0 %v378
    %1124 = vmatprep.subr.mxu0 0.0
    %1125 = vmatpush2.msra.mxu0 0.0
    %1126 = vmatprep.subr.mxu0 0.0
    %1127 = vmatpush2.msra.mxu0 0.0
    %1128 = vmatprep.subr.mxu0 0.0
    %1129 = vmatpush2.msra.mxu0 0.0
    %1130 = vmatprep.subr.mxu0 0.0
    %1131 = vmatpush2.msra.mxu0 0.0
    %1132 = vmatprep.subr.mxu0 0.0
    %1133 = vmatpush2.msra.mxu0 0.0
    %1134 = vmatprep.subr.mxu0 0.0
    %1135 = vmatpush2.msra.mxu0 0.0
    %1136 = vmatprep.subr.mxu0 0.0
    %1137 = vmatpush2.msra.mxu0 0.0
    %1138 = vmatprep.subr.mxu0 0.0
    %1139 = vmatpush2.msra.mxu0 0.0
    %1140 = vmatprep.subr.mxu0 0.0
    %1141 = vmatpush2.msra.mxu0 0.0
    %1142 = vmatprep.subr.mxu0 0.0
    %1143 = vmatpush2.msra.mxu0 0.0
    %1144 = vmatprep.subr.mxu0 0.0
    %1145 = vmatpush2.msra.mxu0 0.0
    %1146 = vmatprep.subr.mxu0 0.0
    %1147 = vmatpush2.msra.mxu0 0.0
    %1148 = vmatprep.subr.mxu0 0.0
    %1149 = vmatpush2.msra.mxu0 0.0
    %1150 = vmatprep.subr.mxu0 0.0
    %1151 = vmatpush2.msra.mxu0 0.0
    %1152 = vmatprep.subr.mxu0 0.0
    %1153 = vmatpush2.msra.mxu0 0.0
    %1154 = vmatprep.subr.mxu0 0.0
    %1155 = vmatpush2.msra.mxu0 0.0
    %1156 = vmatprep.mubr.f32.mxu0 0.0
    %1157 = vmatmul.mubr.f32.gmra.mxu0 %v1091
    %v1158 = vpop.f32.mrf.mxu0
    %v1159 = vadd.f32 %v432, %v1158
    %v1160 = vpop.f32.mrf.mxu0
    %v1161 = vadd.f32 %v436, %v1160
    %1162 = vdwg.mxu0
    %1163 = vmatprep.subr.mxu0 0.0
    %1164 = vmatpush1.msra.mxu0 %v425
    %1165 = vmatprep.subr.mxu0 0.0
    %1166 = vmatpush1.msra.mxu0 %v422
    %1167 = vmatprep.subr.mxu0 0.0
    %1168 = vmatpush1.msra.mxu0 %v419
    %1169 = vmatprep.subr.mxu0 0.0
    %1170 = vmatpush1.msra.mxu0 %v416
    %1171 = vmatprep.subr.mxu0 0.0
    %1172 = vmatpush1.msra.mxu0 %v413
    %1173 = vmatprep.subr.mxu0 0.0
    %1174 = vmatpush1.msra.mxu0 %v410
    %1175 = vmatprep.subr.mxu0 0.0
    %1176 = vmatpush1.msra.mxu0 %v407
    %1177 = vmatprep.subr.mxu0 0.0
    %1178 = vmatpush1.msra.mxu0 %v404
    %1179 = vmatprep.subr.mxu0 0.0
    %1180 = vmatpush1.msra.mxu0 %v401
    %1181 = vmatprep.subr.mxu0 0.0
    %1182 = vmatpush1.msra.mxu0 %v398
    %1183 = vmatprep.subr.mxu0 0.0
    %1184 = vmatpush1.msra.mxu0 %v395
    %1185 = vmatprep.subr.mxu0 0.0
    %1186 = vmatpush1.msra.mxu0 %v392
    %1187 = vmatprep.subr.mxu0 0.0
    %1188 = vmatpush1.msra.mxu0 %v389
    %1189 = vmatprep.subr.mxu0 0.0
    %1190 = vmatpush1.msra.mxu0 %v386
    %1191 = vmatprep.subr.mxu0 0.0
    %1192 = vmatpush1.msra.mxu0 %v383
    %1193 = vmatprep.subr.mxu0 0.0
    %1194 = vmatpush1.msra.mxu0 %v380
    %1195 = vmatprep.subr.mxu0 0.0
    %1196 = vmatpush2.msra.mxu0 0.0
    %1197 = vmatprep.subr.mxu0 0.0
    %1198 = vmatpush2.msra.mxu0 0.0
    %1199 = vmatprep.subr.mxu0 0.0
    %1200 = vmatpush2.msra.mxu0 0.0
    %1201 = vmatprep.subr.mxu0 0.0
    %1202 = vmatpush2.msra.mxu0 0.0
    %1203 = vmatprep.subr.mxu0 0.0
    %1204 = vmatpush2.msra.mxu0 0.0
    %1205 = vmatprep.subr.mxu0 0.0
    %1206 = vmatpush2.msra.mxu0 0.0
    %1207 = vmatprep.subr.mxu0 0.0
    %1208 = vmatpush2.msra.mxu0 0.0
    %1209 = vmatprep.subr.mxu0 0.0
    %1210 = vmatpush2.msra.mxu0 0.0
    %1211 = vmatprep.subr.mxu0 0.0
    %1212 = vmatpush2.msra.mxu0 0.0
    %1213 = vmatprep.subr.mxu0 0.0
    %1214 = vmatpush2.msra.mxu0 0.0
    %1215 = vmatprep.subr.mxu0 0.0
    %1216 = vmatpush2.msra.mxu0 0.0
    %1217 = vmatprep.subr.mxu0 0.0
    %1218 = vmatpush2.msra.mxu0 0.0
    %1219 = vmatprep.subr.mxu0 0.0
    %1220 = vmatpush2.msra.mxu0 0.0
    %1221 = vmatprep.subr.mxu0 0.0
    %1222 = vmatpush2.msra.mxu0 0.0
    %1223 = vmatprep.subr.mxu0 0.0
    %1224 = vmatpush2.msra.mxu0 0.0
    %1225 = vmatprep.subr.mxu0 0.0
    %1226 = vmatpush2.msra.mxu0 0.0
    %1227 = vmatprep.mubr.f32.mxu0 0.0
    %1228 = vmatmul.mubr.f32.gmra.mxu0 %v1091
    %v1229 = vpop.f32.mrf.mxu0
    %v1230 = vadd.f32 %v440, %v1229
    %v1231 = vpop.f32.mrf.mxu0
    %1232 = vdwg.mxu0
    %v1233 = vadd.f32 %v251, %v1159
    %v1234 = vxor.u32 %v1233, 2147483648
    %v1235 = vmul.f32 %v1234, 1.442695
    %v1236 = vpow.pop %v1235
    %v1237 = vadd.f32 %v1236, 1.0
    %v1238 = vrcp.pop %v1237
    %v1239 = vmul.f32 1.0, %v1238
    %v1240 = vadd.f32 %v253, %v1161
    %v1241 = vxor.u32 %v1240, 2147483648
    %v1242 = vmul.f32 %v1241, 1.442695
    %v1243 = vpow.pop %v1242
    %v1244 = vadd.f32 %v1243, 1.0
    %v1245 = vrcp.pop %v1244
    %v1246 = vmul.f32 1.0, %v1245
    %v1247 = vmul.f32 %v1239, %v1230
    %v1248 = vadd.f32 %v360, %v1247
    %v1249 = vtanh.pop %v1248
    %v1250 = vsub.f32 1.0, %v1246
    %v1251 = vmul.f32 %v1250, %v1249
    %v1252 = vmul.f32 %v1246, %v1091
    %v1253 = vadd.f32 %v1251, %v1252
    %1254 = vmatprep.subr.mxu0 %v424
    %1255 = vmatpush1.msra.mxu0 %v423
    %1256 = vmatprep.subr.mxu0 %v421
    %1257 = vmatpush1.msra.mxu0 %v420
    %1258 = vmatprep.subr.mxu0 %v418
    %1259 = vmatpush1.msra.mxu0 %v417
    %1260 = vmatprep.subr.mxu0 %v415
    %1261 = vmatpush1.msra.mxu0 %v414
    %1262 = vmatprep.subr.mxu0 %v412
    %1263 = vmatpush1.msra.mxu0 %v411
    %1264 = vmatprep.subr.mxu0 %v409
    %1265 = vmatpush1.msra.mxu0 %v408
    %1266 = vmatprep.subr.mxu0 %v406
    %1267 = vmatpush1.msra.mxu0 %v405
    %1268 = vmatprep.subr.mxu0 %v403
    %1269 = vmatpush1.msra.mxu0 %v402
    %1270 = vmatprep.subr.mxu0 %v400
    %1271 = vmatpush1.msra.mxu0 %v399
    %1272 = vmatprep.subr.mxu0 %v397
    %1273 = vmatpush1.msra.mxu0 %v396
    %1274 = vmatprep.subr.mxu0 %v394
    %1275 = vmatpush1.msra.mxu0 %v393
    %1276 = vmatprep.subr.mxu0 %v391
    %1277 = vmatpush1.msra.mxu0 %v390
    %1278 = vmatprep.subr.mxu0 %v388
    %1279 = vmatpush1.msra.mxu0 %v387
    %1280 = vmatprep.subr.mxu0 %v385
    %1281 = vmatpush1.msra.mxu0 %v384
    %1282 = vmatprep.subr.mxu0 %v382
    %1283 = vmatpush1.msra.mxu0 %v381
    %1284 = vmatprep.subr.mxu0 %v379
    %1285 = vmatpush1.msra.mxu0 %v378
    %1286 = vmatprep.subr.mxu0 0.0
    %1287 = vmatpush2.msra.mxu0 0.0
    %1288 = vmatprep.subr.mxu0 0.0
    %1289 = vmatpush2.msra.mxu0 0.0
    %1290 = vmatprep.subr.mxu0 0.0
    %1291 = vmatpush2.msra.mxu0 0.0
    %1292 = vmatprep.subr.mxu0 0.0
    %1293 = vmatpush2.msra.mxu0 0.0
    %1294 = vmatprep.subr.mxu0 0.0
    %1295 = vmatpush2.msra.mxu0 0.0
    %1296 = vmatprep.subr.mxu0 0.0
    %1297 = vmatpush2.msra.mxu0 0.0
    %1298 = vmatprep.subr.mxu0 0.0
    %1299 = vmatpush2.msra.mxu0 0.0
    %1300 = vmatprep.subr.mxu0 0.0
    %1301 = vmatpush2.msra.mxu0 0.0
    %1302 = vmatprep.subr.mxu0 0.0
    %1303 = vmatpush2.msra.mxu0 0.0
    %1304 = vmatprep.subr.mxu0 0.0
    %1305 = vmatpush2.msra.mxu0 0.0
    %1306 = vmatprep.subr.mxu0 0.0
    %1307 = vmatpush2.msra.mxu0 0.0
    %1308 = vmatprep.subr.mxu0 0.0
    %1309 = vmatpush2.msra.mxu0 0.0
    %1310 = vmatprep.subr.mxu0 0.0
    %1311 = vmatpush2.msra.mxu0 0.0
    %1312 = vmatprep.subr.mxu0 0.0
    %1313 = vmatpush2.msra.mxu0 0.0
    %1314 = vmatprep.subr.mxu0 0.0
    %1315 = vmatpush2.msra.mxu0 0.0
    %1316 = vmatprep.subr.mxu0 0.0
    %1317 = vmatpush2.msra.mxu0 0.0
    %1318 = vmatprep.mubr.f32.mxu0 0.0
    %1319 = vmatmul.mubr.f32.gmra.mxu0 %v1253
    %v1320 = vpop.f32.mrf.mxu0
    %v1321 = vadd.f32 %v432, %v1320
    %v1322 = vpop.f32.mrf.mxu0
    %v1323 = vadd.f32 %v436, %v1322
    %1324 = vdwg.mxu0
    %1325 = vmatprep.subr.mxu0 0.0
    %1326 = vmatpush1.msra.mxu0 %v425
    %1327 = vmatprep.subr.mxu0 0.0
    %1328 = vmatpush1.msra.mxu0 %v422
    %1329 = vmatprep.subr.mxu0 0.0
    %1330 = vmatpush1.msra.mxu0 %v419
    %1331 = vmatprep.subr.mxu0 0.0
    %1332 = vmatpush1.msra.mxu0 %v416
    %1333 = vmatprep.subr.mxu0 0.0
    %1334 = vmatpush1.msra.mxu0 %v413
    %1335 = vmatprep.subr.mxu0 0.0
    %1336 = vmatpush1.msra.mxu0 %v410
    %1337 = vmatprep.subr.mxu0 0.0
    %1338 = vmatpush1.msra.mxu0 %v407
    %1339 = vmatprep.subr.mxu0 0.0
    %1340 = vmatpush1.msra.mxu0 %v404
    %1341 = vmatprep.subr.mxu0 0.0
    %1342 = vmatpush1.msra.mxu0 %v401
    %1343 = vmatprep.subr.mxu0 0.0
    %1344 = vmatpush1.msra.mxu0 %v398
    %1345 = vmatprep.subr.mxu0 0.0
    %1346 = vmatpush1.msra.mxu0 %v395
    %1347 = vmatprep.subr.mxu0 0.0
    %1348 = vmatpush1.msra.mxu0 %v392
    %1349 = vmatprep.subr.mxu0 0.0
    %1350 = vmatpush1.msra.mxu0 %v389
    %1351 = vmatprep.subr.mxu0 0.0
    %1352 = vmatpush1.msra.mxu0 %v386
    %1353 = vmatprep.subr.mxu0 0.0
    %1354 = vmatpush1.msra.mxu0 %v383
    %1355 = vmatprep.subr.mxu0 0.0
    %1356 = vmatpush1.msra.mxu0 %v380
    %1357 = vmatprep.subr.mxu0 0.0
    %1358 = vmatpush2.msra.mxu0 0.0
    %1359 = vmatprep.subr.mxu0 0.0
    %1360 = vmatpush2.msra.mxu0 0.0
    %1361 = vmatprep.subr.mxu0 0.0
    %1362 = vmatpush2.msra.mxu0 0.0
    %1363 = vmatprep.subr.mxu0 0.0
    %1364 = vmatpush2.msra.mxu0 0.0
    %1365 = vmatprep.subr.mxu0 0.0
    %1366 = vmatpush2.msra.mxu0 0.0
    %1367 = vmatprep.subr.mxu0 0.0
    %1368 = vmatpush2.msra.mxu0 0.0
    %1369 = vmatprep.subr.mxu0 0.0
    %1370 = vmatpush2.msra.mxu0 0.0
    %1371 = vmatprep.subr.mxu0 0.0
    %1372 = vmatpush2.msra.mxu0 0.0
    %1373 = vmatprep.subr.mxu0 0.0
    %1374 = vmatpush2.msra.mxu0 0.0
    %1375 = vmatprep.subr.mxu0 0.0
    %1376 = vmatpush2.msra.mxu0 0.0
    %1377 = vmatprep.subr.mxu0 0.0
    %1378 = vmatpush2.msra.mxu0 0.0
    %1379 = vmatprep.subr.mxu0 0.0
    %1380 = vmatpush2.msra.mxu0 0.0
    %1381 = vmatprep.subr.mxu0 0.0
    %1382 = vmatpush2.msra.mxu0 0.0
    %1383 = vmatprep.subr.mxu0 0.0
    %1384 = vmatpush2.msra.mxu0 0.0
    %1385 = vmatprep.subr.mxu0 0.0
    %1386 = vmatpush2.msra.mxu0 0.0
    %1387 = vmatprep.subr.mxu0 0.0
    %1388 = vmatpush2.msra.mxu0 0.0
    %1389 = vmatprep.mubr.f32.mxu0 0.0
    %1390 = vmatmul.mubr.f32.gmra.mxu0 %v1253
    %v1391 = vpop.f32.mrf.mxu0
    %v1392 = vadd.f32 %v440, %v1391
    %v1393 = vpop.f32.mrf.mxu0
    %1394 = vdwg.mxu0
    %v1395 = vadd.f32 %v257, %v1321
    %v1396 = vxor.u32 %v1395, 2147483648
    %v1397 = vmul.f32 %v1396, 1.442695
    %v1398 = vpow.pop %v1397
    %v1399 = vadd.f32 %v1398, 1.0
    %v1400 = vrcp.pop %v1399
    %v1401 = vmul.f32 1.0, %v1400
    %v1402 = vadd.f32 %v259, %v1323
    %v1403 = vxor.u32 %v1402, 2147483648
    %v1404 = vmul.f32 %v1403, 1.442695
    %v1405 = vpow.pop %v1404
    %v1406 = vadd.f32 %v1405, 1.0
    %v1407 = vrcp.pop %v1406
    %v1408 = vmul.f32 1.0, %v1407
    %v1409 = vmul.f32 %v1401, %v1392
    %v1410 = vadd.f32 %v365, %v1409
    %v1411 = vtanh.pop %v1410
    %v1412 = vsub.f32 1.0, %v1408
    %v1413 = vmul.f32 %v1412, %v1411
    %v1414 = vmul.f32 %v1408, %v1253
    %v1415 = vadd.f32 %v1413, %v1414
    %1416 = vmatprep.subr.mxu0 %v424
    %1417 = vmatpush1.msra.mxu0 %v423
    %1418 = vmatprep.subr.mxu0 %v421
    %1419 = vmatpush1.msra.mxu0 %v420
    %1420 = vmatprep.subr.mxu0 %v418
    %1421 = vmatpush1.msra.mxu0 %v417
    %1422 = vmatprep.subr.mxu0 %v415
    %1423 = vmatpush1.msra.mxu0 %v414
    %1424 = vmatprep.subr.mxu0 %v412
    %1425 = vmatpush1.msra.mxu0 %v411
    %1426 = vmatprep.subr.mxu0 %v409
    %1427 = vmatpush1.msra.mxu0 %v408
    %1428 = vmatprep.subr.mxu0 %v406
    %1429 = vmatpush1.msra.mxu0 %v405
    %1430 = vmatprep.subr.mxu0 %v403
    %1431 = vmatpush1.msra.mxu0 %v402
    %1432 = vmatprep.subr.mxu0 %v400
    %1433 = vmatpush1.msra.mxu0 %v399
    %1434 = vmatprep.subr.mxu0 %v397
    %1435 = vmatpush1.msra.mxu0 %v396
    %1436 = vmatprep.subr.mxu0 %v394
    %1437 = vmatpush1.msra.mxu0 %v393
    %1438 = vmatprep.subr.mxu0 %v391
    %1439 = vmatpush1.msra.mxu0 %v390
    %1440 = vmatprep.subr.mxu0 %v388
    %1441 = vmatpush1.msra.mxu0 %v387
    %1442 = vmatprep.subr.mxu0 %v385
    %1443 = vmatpush1.msra.mxu0 %v384
    %1444 = vmatprep.subr.mxu0 %v382
    %1445 = vmatpush1.msra.mxu0 %v381
    %1446 = vmatprep.subr.mxu0 %v379
    %1447 = vmatpush1.msra.mxu0 %v378
    %1448 = vmatprep.subr.mxu0 0.0
    %1449 = vmatpush2.msra.mxu0 0.0
    %1450 = vmatprep.subr.mxu0 0.0
    %1451 = vmatpush2.msra.mxu0 0.0
    %1452 = vmatprep.subr.mxu0 0.0
    %1453 = vmatpush2.msra.mxu0 0.0
    %1454 = vmatprep.subr.mxu0 0.0
    %1455 = vmatpush2.msra.mxu0 0.0
    %1456 = vmatprep.subr.mxu0 0.0
    %1457 = vmatpush2.msra.mxu0 0.0
    %1458 = vmatprep.subr.mxu0 0.0
    %1459 = vmatpush2.msra.mxu0 0.0
    %1460 = vmatprep.subr.mxu0 0.0
    %1461 = vmatpush2.msra.mxu0 0.0
    %1462 = vmatprep.subr.mxu0 0.0
    %1463 = vmatpush2.msra.mxu0 0.0
    %1464 = vmatprep.subr.mxu0 0.0
    %1465 = vmatpush2.msra.mxu0 0.0
    %1466 = vmatprep.subr.mxu0 0.0
    %1467 = vmatpush2.msra.mxu0 0.0
    %1468 = vmatprep.subr.mxu0 0.0
    %1469 = vmatpush2.msra.mxu0 0.0
    %1470 = vmatprep.subr.mxu0 0.0
    %1471 = vmatpush2.msra.mxu0 0.0
    %1472 = vmatprep.subr.mxu0 0.0
    %1473 = vmatpush2.msra.mxu0 0.0
    %1474 = vmatprep.subr.mxu0 0.0
    %1475 = vmatpush2.msra.mxu0 0.0
    %1476 = vmatprep.subr.mxu0 0.0
    %1477 = vmatpush2.msra.mxu0 0.0
    %1478 = vmatprep.subr.mxu0 0.0
    %1479 = vmatpush2.msra.mxu0 0.0
    %1480 = vmatprep.mubr.f32.mxu0 0.0
    %1481 = vmatmul.mubr.f32.gmra.mxu0 %v1415
    %v1482 = vpop.f32.mrf.mxu0
    %v1483 = vadd.f32 %v432, %v1482
    %v1484 = vpop.f32.mrf.mxu0
    %v1485 = vadd.f32 %v436, %v1484
    %1486 = vdwg.mxu0
    %1487 = vmatprep.subr.mxu0 0.0
    %1488 = vmatpush1.msra.mxu0 %v425
    %1489 = vmatprep.subr.mxu0 0.0
    %1490 = vmatpush1.msra.mxu0 %v422
    %1491 = vmatprep.subr.mxu0 0.0
    %1492 = vmatpush1.msra.mxu0 %v419
    %1493 = vmatprep.subr.mxu0 0.0
    %1494 = vmatpush1.msra.mxu0 %v416
    %1495 = vmatprep.subr.mxu0 0.0
    %1496 = vmatpush1.msra.mxu0 %v413
    %1497 = vmatprep.subr.mxu0 0.0
    %1498 = vmatpush1.msra.mxu0 %v410
    %1499 = vmatprep.subr.mxu0 0.0
    %1500 = vmatpush1.msra.mxu0 %v407
    %1501 = vmatprep.subr.mxu0 0.0
    %1502 = vmatpush1.msra.mxu0 %v404
    %1503 = vmatprep.subr.mxu0 0.0
    %1504 = vmatpush1.msra.mxu0 %v401
    %1505 = vmatprep.subr.mxu0 0.0
    %1506 = vmatpush1.msra.mxu0 %v398
    %1507 = vmatprep.subr.mxu0 0.0
    %1508 = vmatpush1.msra.mxu0 %v395
    %1509 = vmatprep.subr.mxu0 0.0
    %1510 = vmatpush1.msra.mxu0 %v392
    %1511 = vmatprep.subr.mxu0 0.0
    %1512 = vmatpush1.msra.mxu0 %v389
    %1513 = vmatprep.subr.mxu0 0.0
    %1514 = vmatpush1.msra.mxu0 %v386
    %1515 = vmatprep.subr.mxu0 0.0
    %1516 = vmatpush1.msra.mxu0 %v383
    %1517 = vmatprep.subr.mxu0 0.0
    %1518 = vmatpush1.msra.mxu0 %v380
    %1519 = vmatprep.subr.mxu0 0.0
    %1520 = vmatpush2.msra.mxu0 0.0
    %1521 = vmatprep.subr.mxu0 0.0
    %1522 = vmatpush2.msra.mxu0 0.0
    %1523 = vmatprep.subr.mxu0 0.0
    %1524 = vmatpush2.msra.mxu0 0.0
    %1525 = vmatprep.subr.mxu0 0.0
    %1526 = vmatpush2.msra.mxu0 0.0
    %1527 = vmatprep.subr.mxu0 0.0
    %1528 = vmatpush2.msra.mxu0 0.0
    %1529 = vmatprep.subr.mxu0 0.0
    %1530 = vmatpush2.msra.mxu0 0.0
    %1531 = vmatprep.subr.mxu0 0.0
    %1532 = vmatpush2.msra.mxu0 0.0
    %1533 = vmatprep.subr.mxu0 0.0
    %1534 = vmatpush2.msra.mxu0 0.0
    %1535 = vmatprep.subr.mxu0 0.0
    %1536 = vmatpush2.msra.mxu0 0.0
    %1537 = vmatprep.subr.mxu0 0.0
    %1538 = vmatpush2.msra.mxu0 0.0
    %1539 = vmatprep.subr.mxu0 0.0
    %1540 = vmatpush2.msra.mxu0 0.0
    %1541 = vmatprep.subr.mxu0 0.0
    %1542 = vmatpush2.msra.mxu0 0.0
    %1543 = vmatprep.subr.mxu0 0.0
    %1544 = vmatpush2.msra.mxu0 0.0
    %1545 = vmatprep.subr.mxu0 0.0
    %1546 = vmatpush2.msra.mxu0 0.0
    %1547 = vmatprep.subr.mxu0 0.0
    %1548 = vmatpush2.msra.mxu0 0.0
    %1549 = vmatprep.subr.mxu0 0.0
    %1550 = vmatpush2.msra.mxu0 0.0
    %1551 = vmatprep.mubr.f32.mxu0 0.0
    %1552 = vmatmul.mubr.f32.gmra.mxu0 %v1415
    %v1553 = vpop.f32.mrf.mxu0
    %v1554 = vadd.f32 %v440, %v1553
    %v1555 = vpop.f32.mrf.mxu0
    %1556 = vdwg.mxu0
    %v1557 = vadd.f32 %v263, %v1483
    %v1558 = vxor.u32 %v1557, 2147483648
    %v1559 = vmul.f32 %v1558, 1.442695
    %v1560 = vpow.pop %v1559
    %v1561 = vadd.f32 %v1560, 1.0
    %v1562 = vrcp.pop %v1561
    %v1563 = vmul.f32 1.0, %v1562
    %v1564 = vadd.f32 %v265, %v1485
    %v1565 = vxor.u32 %v1564, 2147483648
    %v1566 = vmul.f32 %v1565, 1.442695
    %v1567 = vpow.pop %v1566
    %v1568 = vadd.f32 %v1567, 1.0
    %v1569 = vrcp.pop %v1568
    %v1570 = vmul.f32 1.0, %v1569
    %v1571 = vmul.f32 %v1563, %v1554
    %v1572 = vadd.f32 %v370, %v1571
    %v1573 = vtanh.pop %v1572
    %v1574 = vsub.f32 1.0, %v1570
    %v1575 = vmul.f32 %v1574, %v1573
    %v1576 = vmul.f32 %v1570, %v1415
    %v1577 = vadd.f32 %v1575, %v1576
    %1578 = vmatprep.subr.mxu0 %v424
    %1579 = vmatpush1.msra.mxu0 %v423
    %1580 = vmatprep.subr.mxu0 %v421
    %1581 = vmatpush1.msra.mxu0 %v420
    %1582 = vmatprep.subr.mxu0 %v418
    %1583 = vmatpush1.msra.mxu0 %v417
    %1584 = vmatprep.subr.mxu0 %v415
    %1585 = vmatpush1.msra.mxu0 %v414
    %1586 = vmatprep.subr.mxu0 %v412
    %1587 = vmatpush1.msra.mxu0 %v411
    %1588 = vmatprep.subr.mxu0 %v409
    %1589 = vmatpush1.msra.mxu0 %v408
    %1590 = vmatprep.subr.mxu0 %v406
    %1591 = vmatpush1.msra.mxu0 %v405
    %1592 = vmatprep.subr.mxu0 %v403
    %1593 = vmatpush1.msra.mxu0 %v402
    %1594 = vmatprep.subr.mxu0 %v400
    %1595 = vmatpush1.msra.mxu0 %v399
    %1596 = vmatprep.subr.mxu0 %v397
    %1597 = vmatpush1.msra.mxu0 %v396
    %1598 = vmatprep.subr.mxu0 %v394
    %1599 = vmatpush1.msra.mxu0 %v393
    %1600 = vmatprep.subr.mxu0 %v391
    %1601 = vmatpush1.msra.mxu0 %v390
    %1602 = vmatprep.subr.mxu0 %v388
    %1603 = vmatpush1.msra.mxu0 %v387
    %1604 = vmatprep.subr.mxu0 %v385
    %1605 = vmatpush1.msra.mxu0 %v384
    %1606 = vmatprep.subr.mxu0 %v382
    %1607 = vmatpush1.msra.mxu0 %v381
    %1608 = vmatprep.subr.mxu0 %v379
    %1609 = vmatpush1.msra.mxu0 %v378
    %1610 = vmatprep.subr.mxu0 0.0
    %1611 = vmatpush2.msra.mxu0 0.0
    %1612 = vmatprep.subr.mxu0 0.0
    %1613 = vmatpush2.msra.mxu0 0.0
    %1614 = vmatprep.subr.mxu0 0.0
    %1615 = vmatpush2.msra.mxu0 0.0
    %1616 = vmatprep.subr.mxu0 0.0
    %1617 = vmatpush2.msra.mxu0 0.0
    %1618 = vmatprep.subr.mxu0 0.0
    %1619 = vmatpush2.msra.mxu0 0.0
    %1620 = vmatprep.subr.mxu0 0.0
    %1621 = vmatpush2.msra.mxu0 0.0
    %1622 = vmatprep.subr.mxu0 0.0
    %1623 = vmatpush2.msra.mxu0 0.0
    %1624 = vmatprep.subr.mxu0 0.0
    %1625 = vmatpush2.msra.mxu0 0.0
    %1626 = vmatprep.subr.mxu0 0.0
    %1627 = vmatpush2.msra.mxu0 0.0
    %1628 = vmatprep.subr.mxu0 0.0
    %1629 = vmatpush2.msra.mxu0 0.0
    %1630 = vmatprep.subr.mxu0 0.0
    %1631 = vmatpush2.msra.mxu0 0.0
    %1632 = vmatprep.subr.mxu0 0.0
    %1633 = vmatpush2.msra.mxu0 0.0
    %1634 = vmatprep.subr.mxu0 0.0
    %1635 = vmatpush2.msra.mxu0 0.0
    %1636 = vmatprep.subr.mxu0 0.0
    %1637 = vmatpush2.msra.mxu0 0.0
    %1638 = vmatprep.subr.mxu0 0.0
    %1639 = vmatpush2.msra.mxu0 0.0
    %1640 = vmatprep.subr.mxu0 0.0
    %1641 = vmatpush2.msra.mxu0 0.0
    %1642 = vmatprep.mubr.f32.mxu0 0.0
    %1643 = vmatmul.mubr.f32.gmra.mxu0 %v1577
    %v1644 = vpop.f32.mrf.mxu0
    %v1645 = vadd.f32 %v432, %v1644
    %v1646 = vpop.f32.mrf.mxu0
    %v1647 = vadd.f32 %v436, %v1646
    %1648 = vdwg.mxu0
    %1649 = vmatprep.subr.mxu0 0.0
    %1650 = vmatpush1.msra.mxu0 %v425
    %1651 = vmatprep.subr.mxu0 0.0
    %1652 = vmatpush1.msra.mxu0 %v422
    %1653 = vmatprep.subr.mxu0 0.0
    %1654 = vmatpush1.msra.mxu0 %v419
    %1655 = vmatprep.subr.mxu0 0.0
    %1656 = vmatpush1.msra.mxu0 %v416
    %1657 = vmatprep.subr.mxu0 0.0
    %1658 = vmatpush1.msra.mxu0 %v413
    %1659 = vmatprep.subr.mxu0 0.0
    %1660 = vmatpush1.msra.mxu0 %v410
    %1661 = vmatprep.subr.mxu0 0.0
    %1662 = vmatpush1.msra.mxu0 %v407
    %1663 = vmatprep.subr.mxu0 0.0
    %1664 = vmatpush1.msra.mxu0 %v404
    %1665 = vmatprep.subr.mxu0 0.0
    %1666 = vmatpush1.msra.mxu0 %v401
    %1667 = vmatprep.subr.mxu0 0.0
    %1668 = vmatpush1.msra.mxu0 %v398
    %1669 = vmatprep.subr.mxu0 0.0
    %1670 = vmatpush1.msra.mxu0 %v395
    %1671 = vmatprep.subr.mxu0 0.0
    %1672 = vmatpush1.msra.mxu0 %v392
    %1673 = vmatprep.subr.mxu0 0.0
    %1674 = vmatpush1.msra.mxu0 %v389
    %1675 = vmatprep.subr.mxu0 0.0
    %1676 = vmatpush1.msra.mxu0 %v386
    %1677 = vmatprep.subr.mxu0 0.0
    %1678 = vmatpush1.msra.mxu0 %v383
    %1679 = vmatprep.subr.mxu0 0.0
    %1680 = vmatpush1.msra.mxu0 %v380
    %1681 = vmatprep.subr.mxu0 0.0
    %1682 = vmatpush2.msra.mxu0 0.0
    %1683 = vmatprep.subr.mxu0 0.0
    %1684 = vmatpush2.msra.mxu0 0.0
    %1685 = vmatprep.subr.mxu0 0.0
    %1686 = vmatpush2.msra.mxu0 0.0
    %1687 = vmatprep.subr.mxu0 0.0
    %1688 = vmatpush2.msra.mxu0 0.0
    %1689 = vmatprep.subr.mxu0 0.0
    %1690 = vmatpush2.msra.mxu0 0.0
    %1691 = vmatprep.subr.mxu0 0.0
    %1692 = vmatpush2.msra.mxu0 0.0
    %1693 = vmatprep.subr.mxu0 0.0
    %1694 = vmatpush2.msra.mxu0 0.0
    %1695 = vmatprep.subr.mxu0 0.0
    %1696 = vmatpush2.msra.mxu0 0.0
    %1697 = vmatprep.subr.mxu0 0.0
    %1698 = vmatpush2.msra.mxu0 0.0
    %1699 = vmatprep.subr.mxu0 0.0
    %1700 = vmatpush2.msra.mxu0 0.0
    %1701 = vmatprep.subr.mxu0 0.0
    %1702 = vmatpush2.msra.mxu0 0.0
    %1703 = vmatprep.subr.mxu0 0.0
    %1704 = vmatpush2.msra.mxu0 0.0
    %1705 = vmatprep.subr.mxu0 0.0
    %1706 = vmatpush2.msra.mxu0 0.0
    %1707 = vmatprep.subr.mxu0 0.0
    %1708 = vmatpush2.msra.mxu0 0.0
    %1709 = vmatprep.subr.mxu0 0.0
    %1710 = vmatpush2.msra.mxu0 0.0
    %1711 = vmatprep.subr.mxu0 0.0
    %1712 = vmatpush2.msra.mxu0 0.0
    %1713 = vmatprep.mubr.f32.mxu0 0.0
    %1714 = vmatmul.mubr.f32.gmra.mxu0 %v1577
    %v1715 = vpop.f32.mrf.mxu0
    %v1716 = vadd.f32 %v440, %v1715
    %v1717 = vpop.f32.mrf.mxu0
    %1718 = vdwg.mxu0
    %v1719 = vadd.f32 %v269, %v1645
    %v1720 = vxor.u32 %v1719, 2147483648
    %v1721 = vmul.f32 %v1720, 1.442695
    %v1722 = vpow.pop %v1721
    %v1723 = vadd.f32 %v1722, 1.0
    %v1724 = vrcp.pop %v1723
    %v1725 = vmul.f32 1.0, %v1724
    %v1726 = vadd.f32 %v271, %v1647
    %v1727 = vxor.u32 %v1726, 2147483648
    %v1728 = vmul.f32 %v1727, 1.442695
    %v1729 = vpow.pop %v1728
    %v1730 = vadd.f32 %v1729, 1.0
    %v1731 = vrcp.pop %v1730
    %v1732 = vmul.f32 1.0, %v1731
    %v1733 = vmul.f32 %v1725, %v1716
    %v1734 = vadd.f32 %v375, %v1733
    %v1735 = vtanh.pop %v1734
    %v1736 = vsub.f32 1.0, %v1732
    %v1737 = vmul.f32 %v1736, %v1735
    %v1738 = vmul.f32 %v1732, %v1577
    %v1739 = vadd.f32 %v1737, %v1738
    %1740 = vst [vmem:[#allocation2] sm:$0xff] %v1739
    // Predicated region
    $region50: #{tpu_custom_call.1} parent=1 // pred_check
      %p1741 = pneg %p82
    $region51: #{tpu_custom_call.1} parent=1 // pred_check_branch
      %1743 = sbr.rel (%p1741) target = $region53
    $region52: #{tpu_custom_call.1} parent=1 // pred_region
      %v1744 = vld [vmem:[#allocation9] sm:$0xff]
      %v1745 = vld [vmem:[#allocation9 + $0x8] sm:$0xff]
      %v1746 = vld [vmem:[#allocation9 + $0x10] sm:$0xff]
      %v1747 = vld [vmem:[#allocation9 + $0x18] sm:$0xff]
      %v1748 = vld [vmem:[#allocation9 + $0x20] sm:$0xff]
      %v1749 = vld [vmem:[#allocation9 + $0x28] sm:$0xff]
      %v1750 = vld [vmem:[#allocation9 + $0x30] sm:$0xff]
      %v1751 = vld [vmem:[#allocation9 + $0x38] sm:$0xff]
      %v1752 = vld [vmem:[#allocation9 + $0x40] sm:$0xff]
      %v1753 = vld [vmem:[#allocation9 + $0x48] sm:$0xff]
      %v1754 = vld [vmem:[#allocation9 + $0x50] sm:$0xff]
      %v1755 = vld [vmem:[#allocation9 + $0x58] sm:$0xff]
      %v1756 = vld [vmem:[#allocation9 + $0x60] sm:$0xff]
      %v1757 = vld [vmem:[#allocation9 + $0x68] sm:$0xff]
      %v1758 = vld [vmem:[#allocation9 + $0x70] sm:$0xff]
      %v1759 = vld [vmem:[#allocation9 + $0x78] sm:$0xff]
      %v1760 = vld [vmem:[%s6] sm:$0x1]
      %v1762 = vlaneseq
      %v1763 = vshrl.u32 %v1762, 7
      %v1764 = vsub.s32 0, %v1763
      %v1765 = vrot.slane %v1760, %v1764
      %1767 = vmatprep.subr.mxu0 0.0
      %1768 = vmatpush1.msra.mxu0 %v1759
      %1769 = vmatprep.subr.mxu0 0.0
      %1770 = vmatpush1.msra.mxu0 %v1758
      %1771 = vmatprep.subr.mxu0 0.0
      %1772 = vmatpush1.msra.mxu0 %v1757
      %1773 = vmatprep.subr.mxu0 0.0
      %1774 = vmatpush1.msra.mxu0 %v1756
      %1775 = vmatprep.subr.mxu0 0.0
      %1776 = vmatpush1.msra.mxu0 %v1755
      %1777 = vmatprep.subr.mxu0 0.0
      %1778 = vmatpush1.msra.mxu0 %v1754
      %1779 = vmatprep.subr.mxu0 0.0
      %1780 = vmatpush1.msra.mxu0 %v1753
      %1781 = vmatprep.subr.mxu0 0.0
      %1782 = vmatpush1.msra.mxu0 %v1752
      %1783 = vmatprep.subr.mxu0 0.0
      %1784 = vmatpush1.msra.mxu0 %v1751
      %1785 = vmatprep.subr.mxu0 0.0
      %1786 = vmatpush1.msra.mxu0 %v1750
      %1787 = vmatprep.subr.mxu0 0.0
      %1788 = vmatpush1.msra.mxu0 %v1749
      %1789 = vmatprep.subr.mxu0 0.0
      %1790 = vmatpush1.msra.mxu0 %v1748
      %1791 = vmatprep.subr.mxu0 0.0
      %1792 = vmatpush1.msra.mxu0 %v1747
      %1793 = vmatprep.subr.mxu0 0.0
      %1794 = vmatpush1.msra.mxu0 %v1746
      %1795 = vmatprep.subr.mxu0 0.0
      %1796 = vmatpush1.msra.mxu0 %v1745
      %1797 = vmatprep.subr.mxu0 0.0
      %1798 = vmatpush1.msra.mxu0 %v1744
      %1799 = vmatprep.subr.mxu0 0.0
      %1800 = vmatpush2.msra.mxu0 0.0
      %1801 = vmatprep.subr.mxu0 0.0
      %1802 = vmatpush2.msra.mxu0 0.0
      %1803 = vmatprep.subr.mxu0 0.0
      %1804 = vmatpush2.msra.mxu0 0.0
      %1805 = vmatprep.subr.mxu0 0.0
      %1806 = vmatpush2.msra.mxu0 0.0
      %1807 = vmatprep.subr.mxu0 0.0
      %1808 = vmatpush2.msra.mxu0 0.0
      %1809 = vmatprep.subr.mxu0 0.0
      %1810 = vmatpush2.msra.mxu0 0.0
      %1811 = vmatprep.subr.mxu0 0.0
      %1812 = vmatpush2.msra.mxu0 0.0
      %1813 = vmatprep.subr.mxu0 0.0
      %1814 = vmatpush2.msra.mxu0 0.0
      %1815 = vmatprep.subr.mxu0 0.0
      %1816 = vmatpush2.msra.mxu0 0.0
      %1817 = vmatprep.subr.mxu0 0.0
      %1818 = vmatpush2.msra.mxu0 0.0
      %1819 = vmatprep.subr.mxu0 0.0
      %1820 = vmatpush2.msra.mxu0 0.0
      %1821 = vmatprep.subr.mxu0 0.0
      %1822 = vmatpush2.msra.mxu0 0.0
      %1823 = vmatprep.subr.mxu0 0.0
      %1824 = vmatpush2.msra.mxu0 0.0
      %1825 = vmatprep.subr.mxu0 0.0
      %1826 = vmatpush2.msra.mxu0 0.0
      %1827 = vmatprep.subr.mxu0 0.0
      %1828 = vmatpush2.msra.mxu0 0.0
      %1829 = vmatprep.subr.mxu0 0.0
      %1830 = vmatpush2.msra.mxu0 0.0
      %1831 = vmatprep.mubr.f32.mxu0 0.0
      %1832 = vmatmul.mubr.f32.gmra.mxu0 %v1739
      %v1833 = vpop.f32.mrf.mxu0
      %v1834 = vadd.f32 %v1765, %v1833
      %v1835 = vpop.f32.mrf.mxu0
      %1836 = vdwg.mxu0
      %1837 = vst [vmem:[#allocation11] sm:$0xff] %v1834
    $region53: #{tpu_custom_call.1} parent=1 // pred_fallthru
      _
    // Predicated region
    $region54: #{tpu_custom_call.1} parent=1 // pred_check
      _
    $region55: #{tpu_custom_call.1} parent=1 // pred_check_branch
      %1839 = sbr.rel (0) target = $region57
    $region56: #{tpu_custom_call.1} parent=1 // pred_region
      %s1841 = ssub.s32 128, 128
      %1842 = vsyncadd [#allocation5], %s1841
      %s1844 = sshll.u32 [#allocation11], 4
      %s1845 = int_to_ptr.vmem [resolvable:$true] %s1844
      %1847 = dma.vmem_to_hbm [thread:$0]  %s1845, 128, %s7, [#allocation5]
    $region57: #{tpu_custom_call.1} parent=1 // pred_fallthru
      _
    // Predicated region
    $region58: #{tpu_custom_call.1} parent=1 // pred_check
      _
    $region59: #{tpu_custom_call.1} parent=1 // pred_check_branch
      %1849 = sbr.rel (0) target = $region61
    $region60: #{tpu_custom_call.1} parent=1 // pred_region
      %1850 = dma.done [#allocation5], 128
    $region61: #{tpu_custom_call.1} parent=1 // pred_fallthru
      _
    %1851 = vsyncpa [#allocation4], 1
    %1852 = vsyncpa [#allocation7], 1
    %1853 = vsyncpa [#allocation10], 1
    %1854 = vsyncpa [#allocation5], 1

</llo_original>
